<compile_context>
chip_gen: v7x
topology: tpu7x:2x2x1
jax: 0.10.0
libtpu: 0.0.40
codegen_flags: <defaults>
</compile_context>

<pallas_src>
from functools import partial

import jax
import jax.numpy as jnp
from jax.experimental import pallas as pl
from jax.experimental.pallas import tpu as pltpu

LEAK = 0.2
BN_EPS = 1e-5
K_SIZE = 4
STRIDE = 2
PAD = 1
LANE = 128
# bf16 on the MXU; f32 accumulate + f32 BN/LeakyReLU everywhere.
MXU_DTYPE = jnp.bfloat16
# Explicit scoped-VMEM limit (> v5e's 16 MiB default, safe on every generation).
VMEM_LIMIT_BYTES = 32 * 1024 * 1024


def _round_up(n, m):
    return ((n + m - 1) // m) * m


def _vmem_spec():
    return pl.BlockSpec(memory_space=pltpu.MemorySpace.VMEM)


# ---------------------------------------------------------------------------
# Fused kernel: conv1 -> conv2+BN -> conv3+BN -> all heads
# ---------------------------------------------------------------------------
def fused_disc_kernel(xcol_ref,
                      w1_ref, b1_ref,
                      w2_ref, b2_ref, g2_ref, be2_ref,
                      w3_ref, b3_ref, g3_ref, be3_ref,
                      wh_ref, bh_ref,
                      out_ref,
                      s1_ref, s2_ref, s3_ref):
    # Shapes (all static):
    #   xcol : (B*T1, K*Cin)            pre-built layer-1 im2col rows
    #   w?   : (K*Cin_eff, Cout_pad)    bf16, rows ordered [tap0|tap1|tap2|tap3]
    #   b?,g?,be? : (1, Cout_pad)       f32 (zero on padded lanes)
    #   wh   : (T3*C3p, TOT_pad) bf16,  bh : (1, TOT_pad)
    #   out  : (B, TOT_pad)             lane-dense logits
    #   s1   : (B*(T1+2), C1p) f32      time-padded layer-1 activation scratch
    #   s2   : (B*(T2+2), C2p) f32      time-padded layer-2 activation scratch
    #   s3   : (B*T3, C3p) f32          layer-3 activation scratch
    B = out_ref.shape[0]
    t1 = s1_ref.shape[0] // B - 2
    t2 = s2_ref.shape[0] // B - 2
    t3 = s3_ref.shape[0] // B

    def lrelu(z):
        return jnp.where(z > 0, z, LEAK * z)

    def batchnorm(z, g_ref, be_ref):
        # Train-mode BatchNorm over all (batch, time) rows, folded to one FMA.
        # Correct only because every row lives in this single grid-less
        # invocation (see TODO about two-pass stats once a grid is added).
        mean = jnp.mean(z, axis=0, keepdims=True)
        var = jnp.mean(jnp.square(z - mean), axis=0, keepdims=True)
        scale = g_ref[...] * jax.lax.rsqrt(var + BN_EPS)
        shift = be_ref[...] - mean * scale
        return z * scale + shift

    def conv_rows(src_ref, b, rows_per_batch, t_out, w_ref, b_ref):
        # conv(k=4, s=2, p=1): tap k of output t is padded row 2t + k.
        # 4 strided row slices from VMEM scratch -> lane concat -> ONE MXU dot.
        base = b * rows_per_batch
        taps = [src_ref[pl.ds(base + k, t_out, stride=STRIDE), :]
                for k in range(K_SIZE)]
        col = jnp.concatenate(taps, axis=-1).astype(MXU_DTYPE)
        z = jnp.dot(col, w_ref[...], preferred_element_type=jnp.float32)
        return z + b_ref[...]

    # ---- layer 1: Conv1d(Cin -> C1) + LeakyReLU  (one dot for all batches) ----
    z1 = jnp.dot(xcol_ref[...].astype(MXU_DTYPE), w1_ref[...],
                 preferred_element_type=jnp.float32) + b1_ref[...]
    h1 = lrelu(z1)                                       # (B*T1, C1p) f32
    s1_ref[...] = jnp.zeros(s1_ref.shape, s1_ref.dtype)  # zero rows = conv pad
    for b in range(B):
        s1_ref[pl.ds(b * (t1 + 2) + 1, t1), :] = h1[b * t1:(b + 1) * t1]

    # ---- layer 2: Conv1d(C1 -> C2) + BatchNorm + LeakyReLU --------------------
    z2 = jnp.concatenate(
        [conv_rows(s1_ref, b, t1 + 2, t2, w2_ref, b2_ref) for b in range(B)],
        axis=0)                                          # (B*T2, C2p) f32
    h2 = lrelu(batchnorm(z2, g2_ref, be2_ref))
    s2_ref[...] = jnp.zeros(s2_ref.shape, s2_ref.dtype)
    for b in range(B):
        s2_ref[pl.ds(b * (t2 + 2) + 1, t2), :] = h2[b * t2:(b + 1) * t2]

    # ---- layer 3: Conv1d(C2 -> C3) + BatchNorm + LeakyReLU --------------------
    z3 = jnp.concatenate(
        [conv_rows(s2_ref, b, t2 + 2, t3, w3_ref, b3_ref) for b in range(B)],
        axis=0)                                          # (B*T3, C3p) f32
    s3_ref[...] = lrelu(batchnorm(z3, g3_ref, be3_ref))

    # ---- heads: single (B, T3*C3p) @ (T3*C3p, TOTp) matmul --------------------
    # feat[b, t*C3p + c] = h3[b, t, c]  (head weight was permuted to match).
    feat = jnp.concatenate(
        [s3_ref[pl.ds(t, B, stride=t3), :] for t in range(t3)],
        axis=-1).astype(MXU_DTYPE)
    out_ref[...] = (jnp.dot(feat, wh_ref[...], preferred_element_type=jnp.float32)
                    + bh_ref[...])


# ---------------------------------------------------------------------------
# One-time parameter packing (hoisted out of the per-step forward)
# ---------------------------------------------------------------------------
def _pack_conv(w, b, cin_eff, cout_pad):
    """torch Conv1d (Cout, Cin, K), (Cout,) -> (K*cin_eff, cout_pad) bf16 weight
    (row index = k*cin_eff + c, matching the kernel's [tap0|tap1|tap2|tap3]
    im2col column order) and (1, cout_pad) f32 bias.  Pads are exactly zero."""
    cout, cin, k = w.shape
    wt = jnp.transpose(w, (2, 1, 0))                                  # (K, Cin, Cout)
    wt = jnp.pad(wt, ((0, 0), (0, cin_eff - cin), (0, cout_pad - cout)))
    wt = wt.reshape(k * cin_eff, cout_pad).astype(MXU_DTYPE)
    bt = jnp.pad(b, (0, cout_pad - cout)).reshape(1, cout_pad).astype(jnp.float32)
    return wt, bt


def _pad_vec(v, n):
    return jnp.pad(v, (0, n - v.shape[0])).reshape(1, n).astype(jnp.float32)


def prep_params(params, ctx, window_length, time_series_dims, base_channels):
    c1, c2, c3 = base_channels // 4, base_channels // 2, base_channels
    c1p, c2p, c3p = (_round_up(c, LANE) for c in (c1, c2, c3))
    t3 = window_length // 8

    w1, b1 = _pack_conv(params["w1"], params["b1"], time_series_dims, c1p)
    w2, b2 = _pack_conv(params["w2"], params["b2"], c1p, c2p)
    w3, b3 = _pack_conv(params["w3"], params["b3"], c2p, c3p)

    # gamma/beta zero-padded (NOT one-padded) so padded lanes stay exactly 0.
    g2, be2 = _pad_vec(params["g2"], c2p), _pad_vec(params["be2"], c2p)
    g3, be3 = _pad_vec(params["g3"], c3p), _pad_vec(params["be3"], c3p)

    # Fuse real/fake + all aux heads into one weight, permuted from PyTorch's
    # channel-major flatten of (B, C3, T3) to the kernel's time-major layout.
    names = list(ctx.keys())
    w_all = jnp.concatenate([params["rf_w"]] + [params[f"aux_w_{k}"] for k in names], axis=0)
    b_all = jnp.concatenate([params["rf_b"]] + [params[f"aux_b_{k}"] for k in names], axis=0)
    tot = w_all.shape[0]
    totp = _round_up(tot, LANE)
    wh = jnp.transpose(w_all.reshape(tot, c3, t3), (2, 1, 0))         # (T3, C3, TOT)
    wh = jnp.pad(wh, ((0, 0), (0, c3p - c3), (0, totp - tot)))
    wh = wh.reshape(t3 * c3p, totp).astype(MXU_DTYPE)
    bh = _pad_vec(b_all, totp)

    return {"w1": w1, "b1": b1,
            "w2": w2, "b2": b2, "g2": g2, "be2": be2,
            "w3": w3, "b3": b3, "g3": g3, "be3": be3,
            "wh": wh, "bh": bh}


# ---------------------------------------------------------------------------
# Forward wrapper (single pallas_call)
# ---------------------------------------------------------------------------
@partial(jax.jit, static_argnames=("ctx_items",))
def _forward_impl(x, prepped, ctx_items):
    B, L, cin = x.shape
    t1, t2, t3 = L // 2, L // 4, L // 8
    c1p = prepped["w1"].shape[1]
    c2p = prepped["w2"].shape[1]
    c3p = prepped["w3"].shape[1]
    totp = prepped["wh"].shape[1]

    # Layer-1 im2col (tiny: raw input has only `cin` channels).  Conv padding
    # is the jnp.pad; row (b*T1 + t), column (k*cin + c) = x_padded[b, 2t+k, c].
    xp = jnp.pad(x, ((0, 0), (PAD, PAD), (0, 0)))                 # (B, L+2, C)
    taps = [xp[:, k:k + L:STRIDE, :] for k in range(K_SIZE)]      # each (B, T1, C)
    xcol = jnp.stack(taps, axis=2).reshape(B * t1, K_SIZE * cin)

    inputs = (xcol,
              prepped["w1"], prepped["b1"],
              prepped["w2"], prepped["b2"], prepped["g2"], prepped["be2"],
              prepped["w3"], prepped["b3"], prepped["g3"], prepped["be3"],
              prepped["wh"], prepped["bh"])

    flops = 2 * B * (t1 * (K_SIZE * cin) * c1p
                     + t2 * (K_SIZE * c1p) * c2p
                     + t3 * (K_SIZE * c2p) * c3p
                     + (t3 * c3p) * totp)
    bytes_accessed = sum(int(a.size) * a.dtype.itemsize for a in inputs) + B * totp * 4

    logits = pl.pallas_call(
        fused_disc_kernel,
        out_shape=jax.ShapeDtypeStruct((B, totp), jnp.float32),
        in_specs=[_vmem_spec() for _ in inputs],
        out_specs=_vmem_spec(),
        scratch_shapes=[
            pltpu.VMEM((B * (t1 + 2), c1p), jnp.float32),
            pltpu.VMEM((B * (t2 + 2), c2p), jnp.float32),
            pltpu.VMEM((B * t3, c3p), jnp.float32),
        ],
        compiler_params=pltpu.CompilerParams(vmem_limit_bytes=VMEM_LIMIT_BYTES),
        cost_estimate=pl.CostEstimate(flops=flops, transcendentals=c2p + c3p,
                                      bytes_accessed=bytes_accessed),
    )(*inputs)

    rf = logits[:, 0:1]
    aux, off = {}, 1
    for name, n in ctx_items:
        aux[name] = logits[:, off:off + n]
        off += n
    return rf, aux


def discriminator_forward(x, prepped, ctx):
    """x: (B, L, C) float32 -> (rf_logits (B,1), {name: (B, n_cls)})."""
    return _forward_impl(x, prepped, tuple(ctx.items()))


# ---------------------------------------------------------------------------
# Pure-JAX f32 reference (sanity check of the fused kernel)
# ---------------------------------------------------------------------------
def ref_forward(x_blc, params, ctx):
    x = jnp.transpose(x_blc, (0, 2, 1))

    def conv(x, w, b):
        y = jax.lax.conv_general_dilated(
            x, w, window_strides=(STRIDE,), padding=((PAD, PAD),),
            dimension_numbers=("NCH", "OIH", "NCH"))
        return y + b[None, :, None]

    def lrelu(z):
        return jnp.where(z > 0, z, LEAK * z)

    def bn(z, g, be):
        mean = jnp.mean(z, axis=(0, 2), keepdims=True)
        var = jnp.mean((z - mean) ** 2, axis=(0, 2), keepdims=True)
        return (z - mean) * jax.lax.rsqrt(var + BN_EPS) * g[None, :, None] + be[None, :, None]

    h = lrelu(conv(x, params["w1"], params["b1"]))
    h = lrelu(bn(conv(h, params["w2"], params["b2"]), params["g2"], params["be2"]))
    h = lrelu(bn(conv(h, params["w3"], params["b3"]), params["g3"], params["be3"]))
    feat = h.reshape(h.shape[0], -1)
    rf = feat @ params["rf_w"].T + params["rf_b"]
    aux = {k: feat @ params[f"aux_w_{k}"].T + params[f"aux_b_{k}"] for k in ctx}
    return rf, aux


def init_params(key, time_series_dims, window_length, base_channels, ctx):
    c1, c2, c3 = base_channels // 4, base_channels // 2, base_channels
    feat_dim = window_length // 8 * base_channels
    ks = iter(jax.random.split(key, 32))

    def w(shape, scale=0.1):
        return scale * jax.random.normal(next(ks), shape, jnp.float32)

    p = {
        "w1": w((c1, time_series_dims, K_SIZE)), "b1": w((c1,)),
        "w2": w((c2, c1, K_SIZE)), "b2": w((c2,)),
        "g2": 1.0 + w((c2,)), "be2": w((c2,)),
        "w3": w((c3, c2, K_SIZE)), "b3": w((c3,)),
        "g3": 1.0 + w((c3,)), "be3": w((c3,)),
        "rf_w": w((1, feat_dim)), "rf_b": w((1,)),
    }
    for name, n_cls in ctx.items():
        p[f"aux_w_{name}"] = w((n_cls, feat_dim))
        p[f"aux_b_{name}"] = w((n_cls,))
    return p


if __name__ == "__main__":
    B, window_length, time_series_dims = 2, 16, 4
    base_channels = 32
    ctx = {"month": 12, "weekday": 7}

    key = jax.random.PRNGKey(0)
    k_param, k_x = jax.random.split(key)
    params = init_params(k_param, time_series_dims, window_length, base_channels, ctx)
    prepped = prep_params(params, ctx, window_length, time_series_dims, base_channels)
    x = jax.random.normal(k_x, (B, window_length, time_series_dims), jnp.float32)

    rf_logits, aux_logits = discriminator_forward(x, prepped, ctx)
    jax.block_until_ready(rf_logits)
    for v in aux_logits.values():
        jax.block_until_ready(v)

    rf_ref, aux_ref = ref_forward(x, params, ctx)
    # Tolerance accounts for bf16 MXU operands (accumulation / BN / LeakyReLU are
    # f32); any structural or indexing bug would produce O(1) errors instead.
    TOL = dict(atol=4e-2, rtol=4e-2)
    assert rf_logits.shape == (B, 1)
    assert jnp.allclose(rf_logits, rf_ref, **TOL), \
        f"rf mismatch, max abs err {jnp.max(jnp.abs(rf_logits - rf_ref))}"
    for name, n_cls in ctx.items():
        assert aux_logits[name].shape == (B, n_cls)
        assert jnp.allclose(aux_logits[name], aux_ref[name], **TOL), \
            f"{name} mismatch, max abs err {jnp.max(jnp.abs(aux_logits[name] - aux_ref[name]))}"

    print("KERNEL_OK")
</pallas_src>

<mosaic_0001>
module attributes {stable_mosaic.version = 11 : i64} {
  func.func @fused_disc_kernel(%arg0: memref<16x16xf32, #tpu.memory_space<vmem>>, %arg1: memref<16x128xbf16, #tpu.memory_space<vmem>>, %arg2: memref<1x128xf32, #tpu.memory_space<vmem>>, %arg3: memref<512x128xbf16, #tpu.memory_space<vmem>>, %arg4: memref<1x128xf32, #tpu.memory_space<vmem>>, %arg5: memref<1x128xf32, #tpu.memory_space<vmem>>, %arg6: memref<1x128xf32, #tpu.memory_space<vmem>>, %arg7: memref<512x128xbf16, #tpu.memory_space<vmem>>, %arg8: memref<1x128xf32, #tpu.memory_space<vmem>>, %arg9: memref<1x128xf32, #tpu.memory_space<vmem>>, %arg10: memref<1x128xf32, #tpu.memory_space<vmem>>, %arg11: memref<256x128xbf16, #tpu.memory_space<vmem>>, %arg12: memref<1x128xf32, #tpu.memory_space<vmem>>, %arg13: memref<2x128xf32, #tpu.memory_space<vmem>>, %arg14: memref<20x128xf32, #tpu.memory_space<vmem>>, %arg15: memref<12x128xf32, #tpu.memory_space<vmem>>, %arg16: memref<4x128xf32, #tpu.memory_space<vmem>>) attributes {dimension_semantics = [], scalar_prefetch = 0 : i64, scratch_operands = 3 : i64, tpu.core_type = #tpu.core_type<tc>} {
    %c0 = arith.constant 0 : index
    %c0_0 = arith.constant 0 : index
    %0 = vector.load %arg0[%c0, %c0_0] : memref<16x16xf32, #tpu.memory_space<vmem>>, vector<16x16xf32>
    %1 = arith.truncf %0 : vector<16x16xf32> to vector<16x16xbf16>
    %c0_1 = arith.constant 0 : index
    %c0_2 = arith.constant 0 : index
    %2 = vector.load %arg1[%c0_1, %c0_2] : memref<16x128xbf16, #tpu.memory_space<vmem>>, vector<16x128xbf16>
    %cst = arith.constant dense<0.000000e+00> : vector<16x128xf32>
    %3 = tpu.matmul %1, %2, %cst {dimension_numbers = #tpu.dot_dimension_numbers<[1], [0], [0], [1], [0, 0, 1, 1], [], []>} : vector<16x16xbf16>, vector<16x128xbf16>, vector<16x128xf32> -> vector<16x128xf32>
    %c0_3 = arith.constant 0 : index
    %c0_4 = arith.constant 0 : index
    %4 = vector.load %arg2[%c0_3, %c0_4] : memref<1x128xf32, #tpu.memory_space<vmem>>, vector<1x128xf32>
    %5 = vector.broadcast %4 : vector<1x128xf32> to vector<16x128xf32>
    %6 = arith.addf %3, %5 : vector<16x128xf32>
    %cst_5 = arith.constant 0.000000e+00 : f32
    %7 = vector.broadcast %cst_5 : f32 to vector<16x128xf32>
    %8 = arith.cmpf ogt, %6, %7 : vector<16x128xf32>
    %cst_6 = arith.constant 2.000000e-01 : f32
    %9 = vector.broadcast %cst_6 : f32 to vector<16x128xf32>
    %10 = arith.mulf %9, %6 : vector<16x128xf32>
    %11 = arith.select %8, %6, %10 : vector<16x128xi1>, vector<16x128xf32>
    %cst_7 = arith.constant 0.000000e+00 : f32
    %12 = vector.broadcast %cst_7 : f32 to vector<20x128xf32>
    %c0_8 = arith.constant 0 : index
    %c0_9 = arith.constant 0 : index
    %13 = vector.load %arg14[%c0_8, %c0_9] : memref<20x128xf32, #tpu.memory_space<vmem>>, vector<20x128xf32>
    tpu.vector_store %arg14[%c0_8, %c0_9], %12 {strides = array<i32>} : memref<20x128xf32, #tpu.memory_space<vmem>>, vector<20x128xf32>,
    %14 = vector.extract_strided_slice %11 {offsets = [0, 0], sizes = [8, 128], strides = [1, 1]} : vector<16x128xf32> to vector<8x128xf32>
    %c1 = arith.constant 1 : index
    %c0_10 = arith.constant 0 : index
    %15 = vector.load %arg14[%c1, %c0_10] : memref<20x128xf32, #tpu.memory_space<vmem>>, vector<8x128xf32>
    tpu.vector_store %arg14[%c1, %c0_10], %14 {strides = array<i32>} : memref<20x128xf32, #tpu.memory_space<vmem>>, vector<8x128xf32>,
    %16 = vector.extract_strided_slice %11 {offsets = [8, 0], sizes = [8, 128], strides = [1, 1]} : vector<16x128xf32> to vector<8x128xf32>
    %c11 = arith.constant 11 : index
    %c0_11 = arith.constant 0 : index
    %17 = vector.load %arg14[%c11, %c0_11] : memref<20x128xf32, #tpu.memory_space<vmem>>, vector<8x128xf32>
    tpu.vector_store %arg14[%c11, %c0_11], %16 {strides = array<i32>} : memref<20x128xf32, #tpu.memory_space<vmem>>, vector<8x128xf32>,
    %c0_12 = arith.constant 0 : index
    %c0_13 = arith.constant 0 : index
    %18 = tpu.strided_load %arg14[%c0_12, %c0_13] {strides = array<i32: 2, 1>} : memref<20x128xf32, #tpu.memory_space<vmem>>, vector<4x128xf32>
    %c1_14 = arith.constant 1 : index
    %c0_15 = arith.constant 0 : index
    %19 = tpu.strided_load %arg14[%c1_14, %c0_15] {strides = array<i32: 2, 1>} : memref<20x128xf32, #tpu.memory_space<vmem>>, vector<4x128xf32>
    %c2 = arith.constant 2 : index
    %c0_16 = arith.constant 0 : index
    %20 = tpu.strided_load %arg14[%c2, %c0_16] {strides = array<i32: 2, 1>} : memref<20x128xf32, #tpu.memory_space<vmem>>, vector<4x128xf32>
    %c3 = arith.constant 3 : index
    %c0_17 = arith.constant 0 : index
    %21 = tpu.strided_load %arg14[%c3, %c0_17] {strides = array<i32: 2, 1>} : memref<20x128xf32, #tpu.memory_space<vmem>>, vector<4x128xf32>
    %22 = tpu.concatenate %18, %19, %20, %21 in 1 : vector<4x128xf32>, vector<4x128xf32>, vector<4x128xf32>, vector<4x128xf32> -> vector<4x512xf32>
    %23 = arith.truncf %22 : vector<4x512xf32> to vector<4x512xbf16>
    %c0_18 = arith.constant 0 : index
    %c0_19 = arith.constant 0 : index
    %24 = vector.load %arg3[%c0_18, %c0_19] : memref<512x128xbf16, #tpu.memory_space<vmem>>, vector<512x128xbf16>
    %cst_20 = arith.constant dense<0.000000e+00> : vector<4x128xf32>
    %25 = tpu.matmul %23, %24, %cst_20 {dimension_numbers = #tpu.dot_dimension_numbers<[1], [0], [0], [1], [0, 0, 1, 1], [], []>} : vector<4x512xbf16>, vector<512x128xbf16>, vector<4x128xf32> -> vector<4x128xf32>
    %c0_21 = arith.constant 0 : index
    %c0_22 = arith.constant 0 : index
    %26 = vector.load %arg4[%c0_21, %c0_22] : memref<1x128xf32, #tpu.memory_space<vmem>>, vector<1x128xf32>
    %27 = vector.broadcast %26 : vector<1x128xf32> to vector<4x128xf32>
    %28 = arith.addf %25, %27 : vector<4x128xf32>
    %c10 = arith.constant 10 : index
    %c0_23 = arith.constant 0 : index
    %29 = tpu.strided_load %arg14[%c10, %c0_23] {strides = array<i32: 2, 1>} : memref<20x128xf32, #tpu.memory_space<vmem>>, vector<4x128xf32>
    %c11_24 = arith.constant 11 : index
    %c0_25 = arith.constant 0 : index
    %30 = tpu.strided_load %arg14[%c11_24, %c0_25] {strides = array<i32: 2, 1>} : memref<20x128xf32, #tpu.memory_space<vmem>>, vector<4x128xf32>
    %c12 = arith.constant 12 : index
    %c0_26 = arith.constant 0 : index
    %31 = tpu.strided_load %arg14[%c12, %c0_26] {strides = array<i32: 2, 1>} : memref<20x128xf32, #tpu.memory_space<vmem>>, vector<4x128xf32>
    %c13 = arith.constant 13 : index
    %c0_27 = arith.constant 0 : index
    %32 = tpu.strided_load %arg14[%c13, %c0_27] {strides = array<i32: 2, 1>} : memref<20x128xf32, #tpu.memory_space<vmem>>, vector<4x128xf32>
    %33 = tpu.concatenate %29, %30, %31, %32 in 1 : vector<4x128xf32>, vector<4x128xf32>, vector<4x128xf32>, vector<4x128xf32> -> vector<4x512xf32>
    %34 = arith.truncf %33 : vector<4x512xf32> to vector<4x512xbf16>
    %c0_28 = arith.constant 0 : index
    %c0_29 = arith.constant 0 : index
    %35 = vector.load %arg3[%c0_28, %c0_29] : memref<512x128xbf16, #tpu.memory_space<vmem>>, vector<512x128xbf16>
    %cst_30 = arith.constant dense<0.000000e+00> : vector<4x128xf32>
    %36 = tpu.matmul %34, %35, %cst_30 {dimension_numbers = #tpu.dot_dimension_numbers<[1], [0], [0], [1], [0, 0, 1, 1], [], []>} : vector<4x512xbf16>, vector<512x128xbf16>, vector<4x128xf32> -> vector<4x128xf32>
    %c0_31 = arith.constant 0 : index
    %c0_32 = arith.constant 0 : index
    %37 = vector.load %arg4[%c0_31, %c0_32] : memref<1x128xf32, #tpu.memory_space<vmem>>, vector<1x128xf32>
    %38 = vector.broadcast %37 : vector<1x128xf32> to vector<4x128xf32>
    %39 = arith.addf %36, %38 : vector<4x128xf32>
    %40 = tpu.concatenate %28, %39 in 0 : vector<4x128xf32>, vector<4x128xf32> -> vector<8x128xf32>
    %cst_33 = arith.constant dense<0.000000e+00> : vector<128xf32>
    %41 = vector.multi_reduction <add>, %40, %cst_33 [0] : vector<8x128xf32> to vector<128xf32>
    %42 = vector.shape_cast %41 : vector<128xf32> to vector<1x128xf32>
    %cst_34 = arith.constant 8.000000e+00 : f32
    %43 = vector.broadcast %cst_34 : f32 to vector<1x128xf32>
    %44 = arith.divf %42, %43 : vector<1x128xf32>
    %45 = vector.broadcast %44 : vector<1x128xf32> to vector<8x128xf32>
    %46 = arith.subf %40, %45 : vector<8x128xf32>
    %47 = arith.mulf %46, %46 : vector<8x128xf32>
    %cst_35 = arith.constant dense<0.000000e+00> : vector<128xf32>
    %48 = vector.multi_reduction <add>, %47, %cst_35 [0] : vector<8x128xf32> to vector<128xf32>
    %49 = vector.shape_cast %48 : vector<128xf32> to vector<1x128xf32>
    %cst_36 = arith.constant 8.000000e+00 : f32
    %50 = vector.broadcast %cst_36 : f32 to vector<1x128xf32>
    %51 = arith.divf %49, %50 : vector<1x128xf32>
    %c0_37 = arith.constant 0 : index
    %c0_38 = arith.constant 0 : index
    %52 = vector.load %arg5[%c0_37, %c0_38] : memref<1x128xf32, #tpu.memory_space<vmem>>, vector<1x128xf32>
    %cst_39 = arith.constant 9.99999974E-6 : f32
    %53 = vector.broadcast %cst_39 : f32 to vector<1x128xf32>
    %54 = arith.addf %51, %53 : vector<1x128xf32>
    %55 = math.rsqrt %54 : vector<1x128xf32>
    %56 = arith.mulf %52, %55 : vector<1x128xf32>
    %c0_40 = arith.constant 0 : index
    %c0_41 = arith.constant 0 : index
    %57 = vector.load %arg6[%c0_40, %c0_41] : memref<1x128xf32, #tpu.memory_space<vmem>>, vector<1x128xf32>
    %58 = arith.mulf %44, %56 : vector<1x128xf32>
    %59 = arith.subf %57, %58 : vector<1x128xf32>
    %60 = vector.broadcast %56 : vector<1x128xf32> to vector<8x128xf32>
    %61 = arith.mulf %40, %60 : vector<8x128xf32>
    %62 = vector.broadcast %59 : vector<1x128xf32> to vector<8x128xf32>
    %63 = arith.addf %61, %62 : vector<8x128xf32>
    %cst_42 = arith.constant 0.000000e+00 : f32
    %64 = vector.broadcast %cst_42 : f32 to vector<8x128xf32>
    %65 = arith.cmpf ogt, %63, %64 : vector<8x128xf32>
    %cst_43 = arith.constant 2.000000e-01 : f32
    %66 = vector.broadcast %cst_43 : f32 to vector<8x128xf32>
    %67 = arith.mulf %66, %63 : vector<8x128xf32>
    %68 = arith.select %65, %63, %67 : vector<8x128xi1>, vector<8x128xf32>
    %cst_44 = arith.constant 0.000000e+00 : f32
    %69 = vector.broadcast %cst_44 : f32 to vector<12x128xf32>
    %c0_45 = arith.constant 0 : index
    %c0_46 = arith.constant 0 : index
    %70 = vector.load %arg15[%c0_45, %c0_46] : memref<12x128xf32, #tpu.memory_space<vmem>>, vector<12x128xf32>
    tpu.vector_store %arg15[%c0_45, %c0_46], %69 {strides = array<i32>} : memref<12x128xf32, #tpu.memory_space<vmem>>, vector<12x128xf32>,
    %71 = vector.extract_strided_slice %68 {offsets = [0, 0], sizes = [4, 128], strides = [1, 1]} : vector<8x128xf32> to vector<4x128xf32>
    %c1_47 = arith.constant 1 : index
    %c0_48 = arith.constant 0 : index
    %72 = vector.load %arg15[%c1_47, %c0_48] : memref<12x128xf32, #tpu.memory_space<vmem>>, vector<4x128xf32>
    tpu.vector_store %arg15[%c1_47, %c0_48], %71 {strides = array<i32>} : memref<12x128xf32, #tpu.memory_space<vmem>>, vector<4x128xf32>,
    %73 = vector.extract_strided_slice %68 {offsets = [4, 0], sizes = [4, 128], strides = [1, 1]} : vector<8x128xf32> to vector<4x128xf32>
    %c7 = arith.constant 7 : index
    %c0_49 = arith.constant 0 : index
    %74 = vector.load %arg15[%c7, %c0_49] : memref<12x128xf32, #tpu.memory_space<vmem>>, vector<4x128xf32>
    tpu.vector_store %arg15[%c7, %c0_49], %73 {strides = array<i32>} : memref<12x128xf32, #tpu.memory_space<vmem>>, vector<4x128xf32>,
    %c0_50 = arith.constant 0 : index
    %c0_51 = arith.constant 0 : index
    %75 = tpu.strided_load %arg15[%c0_50, %c0_51] {strides = array<i32: 2, 1>} : memref<12x128xf32, #tpu.memory_space<vmem>>, vector<2x128xf32>
    %c1_52 = arith.constant 1 : index
    %c0_53 = arith.constant 0 : index
    %76 = tpu.strided_load %arg15[%c1_52, %c0_53] {strides = array<i32: 2, 1>} : memref<12x128xf32, #tpu.memory_space<vmem>>, vector<2x128xf32>
    %c2_54 = arith.constant 2 : index
    %c0_55 = arith.constant 0 : index
    %77 = tpu.strided_load %arg15[%c2_54, %c0_55] {strides = array<i32: 2, 1>} : memref<12x128xf32, #tpu.memory_space<vmem>>, vector<2x128xf32>
    %c3_56 = arith.constant 3 : index
    %c0_57 = arith.constant 0 : index
    %78 = tpu.strided_load %arg15[%c3_56, %c0_57] {strides = array<i32: 2, 1>} : memref<12x128xf32, #tpu.memory_space<vmem>>, vector<2x128xf32>
    %79 = tpu.concatenate %75, %76, %77, %78 in 1 : vector<2x128xf32>, vector<2x128xf32>, vector<2x128xf32>, vector<2x128xf32> -> vector<2x512xf32>
    %80 = arith.truncf %79 : vector<2x512xf32> to vector<2x512xbf16>
    %c0_58 = arith.constant 0 : index
    %c0_59 = arith.constant 0 : index
    %81 = vector.load %arg7[%c0_58, %c0_59] : memref<512x128xbf16, #tpu.memory_space<vmem>>, vector<512x128xbf16>
    %cst_60 = arith.constant dense<0.000000e+00> : vector<2x128xf32>
    %82 = tpu.matmul %80, %81, %cst_60 {dimension_numbers = #tpu.dot_dimension_numbers<[1], [0], [0], [1], [0, 0, 1, 1], [], []>} : vector<2x512xbf16>, vector<512x128xbf16>, vector<2x128xf32> -> vector<2x128xf32>
    %c0_61 = arith.constant 0 : index
    %c0_62 = arith.constant 0 : index
    %83 = vector.load %arg8[%c0_61, %c0_62] : memref<1x128xf32, #tpu.memory_space<vmem>>, vector<1x128xf32>
    %84 = vector.broadcast %83 : vector<1x128xf32> to vector<2x128xf32>
    %85 = arith.addf %82, %84 : vector<2x128xf32>
    %c6 = arith.constant 6 : index
    %c0_63 = arith.constant 0 : index
    %86 = tpu.strided_load %arg15[%c6, %c0_63] {strides = array<i32: 2, 1>} : memref<12x128xf32, #tpu.memory_space<vmem>>, vector<2x128xf32>
    %c7_64 = arith.constant 7 : index
    %c0_65 = arith.constant 0 : index
    %87 = tpu.strided_load %arg15[%c7_64, %c0_65] {strides = array<i32: 2, 1>} : memref<12x128xf32, #tpu.memory_space<vmem>>, vector<2x128xf32>
    %c8 = arith.constant 8 : index
    %c0_66 = arith.constant 0 : index
    %88 = tpu.strided_load %arg15[%c8, %c0_66] {strides = array<i32: 2, 1>} : memref<12x128xf32, #tpu.memory_space<vmem>>, vector<2x128xf32>
    %c9 = arith.constant 9 : index
    %c0_67 = arith.constant 0 : index
    %89 = tpu.strided_load %arg15[%c9, %c0_67] {strides = array<i32: 2, 1>} : memref<12x128xf32, #tpu.memory_space<vmem>>, vector<2x128xf32>
    %90 = tpu.concatenate %86, %87, %88, %89 in 1 : vector<2x128xf32>, vector<2x128xf32>, vector<2x128xf32>, vector<2x128xf32> -> vector<2x512xf32>
    %91 = arith.truncf %90 : vector<2x512xf32> to vector<2x512xbf16>
    %c0_68 = arith.constant 0 : index
    %c0_69 = arith.constant 0 : index
    %92 = vector.load %arg7[%c0_68, %c0_69] : memref<512x128xbf16, #tpu.memory_space<vmem>>, vector<512x128xbf16>
    %cst_70 = arith.constant dense<0.000000e+00> : vector<2x128xf32>
    %93 = tpu.matmul %91, %92, %cst_70 {dimension_numbers = #tpu.dot_dimension_numbers<[1], [0], [0], [1], [0, 0, 1, 1], [], []>} : vector<2x512xbf16>, vector<512x128xbf16>, vector<2x128xf32> -> vector<2x128xf32>
    %c0_71 = arith.constant 0 : index
    %c0_72 = arith.constant 0 : index
    %94 = vector.load %arg8[%c0_71, %c0_72] : memref<1x128xf32, #tpu.memory_space<vmem>>, vector<1x128xf32>
    %95 = vector.broadcast %94 : vector<1x128xf32> to vector<2x128xf32>
    %96 = arith.addf %93, %95 : vector<2x128xf32>
    %97 = tpu.concatenate %85, %96 in 0 : vector<2x128xf32>, vector<2x128xf32> -> vector<4x128xf32>
    %cst_73 = arith.constant dense<0.000000e+00> : vector<128xf32>
    %98 = vector.multi_reduction <add>, %97, %cst_73 [0] : vector<4x128xf32> to vector<128xf32>
    %99 = vector.shape_cast %98 : vector<128xf32> to vector<1x128xf32>
    %cst_74 = arith.constant 4.000000e+00 : f32
    %100 = vector.broadcast %cst_74 : f32 to vector<1x128xf32>
    %101 = arith.divf %99, %100 : vector<1x128xf32>
    %102 = vector.broadcast %101 : vector<1x128xf32> to vector<4x128xf32>
    %103 = arith.subf %97, %102 : vector<4x128xf32>
    %104 = arith.mulf %103, %103 : vector<4x128xf32>
    %cst_75 = arith.constant dense<0.000000e+00> : vector<128xf32>
    %105 = vector.multi_reduction <add>, %104, %cst_75 [0] : vector<4x128xf32> to vector<128xf32>
    %106 = vector.shape_cast %105 : vector<128xf32> to vector<1x128xf32>
    %cst_76 = arith.constant 4.000000e+00 : f32
    %107 = vector.broadcast %cst_76 : f32 to vector<1x128xf32>
    %108 = arith.divf %106, %107 : vector<1x128xf32>
    %c0_77 = arith.constant 0 : index
    %c0_78 = arith.constant 0 : index
    %109 = vector.load %arg9[%c0_77, %c0_78] : memref<1x128xf32, #tpu.memory_space<vmem>>, vector<1x128xf32>
    %cst_79 = arith.constant 9.99999974E-6 : f32
    %110 = vector.broadcast %cst_79 : f32 to vector<1x128xf32>
    %111 = arith.addf %108, %110 : vector<1x128xf32>
    %112 = math.rsqrt %111 : vector<1x128xf32>
    %113 = arith.mulf %109, %112 : vector<1x128xf32>
    %c0_80 = arith.constant 0 : index
    %c0_81 = arith.constant 0 : index
    %114 = vector.load %arg10[%c0_80, %c0_81] : memref<1x128xf32, #tpu.memory_space<vmem>>, vector<1x128xf32>
    %115 = arith.mulf %101, %113 : vector<1x128xf32>
    %116 = arith.subf %114, %115 : vector<1x128xf32>
    %117 = vector.broadcast %113 : vector<1x128xf32> to vector<4x128xf32>
    %118 = arith.mulf %97, %117 : vector<4x128xf32>
    %119 = vector.broadcast %116 : vector<1x128xf32> to vector<4x128xf32>
    %120 = arith.addf %118, %119 : vector<4x128xf32>
    %cst_82 = arith.constant 0.000000e+00 : f32
    %121 = vector.broadcast %cst_82 : f32 to vector<4x128xf32>
    %122 = arith.cmpf ogt, %120, %121 : vector<4x128xf32>
    %cst_83 = arith.constant 2.000000e-01 : f32
    %123 = vector.broadcast %cst_83 : f32 to vector<4x128xf32>
    %124 = arith.mulf %123, %120 : vector<4x128xf32>
    %125 = arith.select %122, %120, %124 : vector<4x128xi1>, vector<4x128xf32>
    %c0_84 = arith.constant 0 : index
    %c0_85 = arith.constant 0 : index
    %126 = vector.load %arg16[%c0_84, %c0_85] : memref<4x128xf32, #tpu.memory_space<vmem>>, vector<4x128xf32>
    tpu.vector_store %arg16[%c0_84, %c0_85], %125 {strides = array<i32>} : memref<4x128xf32, #tpu.memory_space<vmem>>, vector<4x128xf32>,
    %c0_86 = arith.constant 0 : index
    %c0_87 = arith.constant 0 : index
    %127 = tpu.strided_load %arg16[%c0_86, %c0_87] {strides = array<i32: 2, 1>} : memref<4x128xf32, #tpu.memory_space<vmem>>, vector<2x128xf32>
    %c1_88 = arith.constant 1 : index
    %c0_89 = arith.constant 0 : index
    %128 = tpu.strided_load %arg16[%c1_88, %c0_89] {strides = array<i32: 2, 1>} : memref<4x128xf32, #tpu.memory_space<vmem>>, vector<2x128xf32>
    %129 = tpu.concatenate %127, %128 in 1 : vector<2x128xf32>, vector<2x128xf32> -> vector<2x256xf32>
    %130 = arith.truncf %129 : vector<2x256xf32> to vector<2x256xbf16>
    %c0_90 = arith.constant 0 : index
    %c0_91 = arith.constant 0 : index
    %131 = vector.load %arg11[%c0_90, %c0_91] : memref<256x128xbf16, #tpu.memory_space<vmem>>, vector<256x128xbf16>
    %cst_92 = arith.constant dense<0.000000e+00> : vector<2x128xf32>
    %132 = tpu.matmul %130, %131, %cst_92 {dimension_numbers = #tpu.dot_dimension_numbers<[1], [0], [0], [1], [0, 0, 1, 1], [], []>} : vector<2x256xbf16>, vector<256x128xbf16>, vector<2x128xf32> -> vector<2x128xf32>
    %c0_93 = arith.constant 0 : index
    %c0_94 = arith.constant 0 : index
    %133 = vector.load %arg12[%c0_93, %c0_94] : memref<1x128xf32, #tpu.memory_space<vmem>>, vector<1x128xf32>
    %134 = vector.broadcast %133 : vector<1x128xf32> to vector<2x128xf32>
    %135 = arith.addf %132, %134 : vector<2x128xf32>
    %c0_95 = arith.constant 0 : index
    %c0_96 = arith.constant 0 : index
    %136 = vector.load %arg13[%c0_95, %c0_96] : memref<2x128xf32, #tpu.memory_space<vmem>>, vector<2x128xf32>
    tpu.vector_store %arg13[%c0_95, %c0_96], %135 {strides = array<i32>} : memref<2x128xf32, #tpu.memory_space<vmem>>, vector<2x128xf32>,
    return
  }
}

</mosaic_0001>

<llo_original>
// kernel: _forward_impl.1
$region0: #{_forward_impl.1}
  #allocation0 [shape = 'u32[]', space=smem, size = 0x4, offset = 0x4, fixed_abs, tag = 'smem constant byte address 0x4 - core index']
  #allocation1 [shape = 'u32[144,128]{1,0:T(1,128)}', space=vmem, size = 0x12000, scoped, tag = 'internal scratch']
  #allocation2 [shape = 'f32[20,128]{1,0:T(8,128)}', space=vmem, size = 0x3000, scoped, tag = 'scratch operand']
  #allocation3 [shape = 'f32[12,128]{1,0:T(8,128)}', space=vmem, size = 0x2000, scoped, tag = 'scratch operand']
  #allocation4 [shape = 'f32[4,128]{1,0:T(4,128)}', space=vmem, size = 0x800, scoped, tag = 'scratch operand']
  %s0 = inlined_call_operand.vmem [shape: f32[16,16], index: 0, kind: input, shape index: {}]
  %s1 = inlined_call_operand.vmem [shape: bf16[16,128], index: 1, kind: input, shape index: {}]
  %s2 = inlined_call_operand.vmem [shape: f32[1,128], index: 2, kind: input, shape index: {}]
  %s3 = inlined_call_operand.vmem [shape: bf16[512,128], index: 3, kind: input, shape index: {}]
  %s4 = inlined_call_operand.vmem [shape: f32[1,128], index: 4, kind: input, shape index: {}]
  %s5 = inlined_call_operand.vmem [shape: f32[1,128], index: 5, kind: input, shape index: {}]
  %s6 = inlined_call_operand.vmem [shape: f32[1,128], index: 6, kind: input, shape index: {}]
  %s7 = inlined_call_operand.hbm [shape: bf16[512,128], index: 7, kind: input, shape index: {}]
  %s8 = inlined_call_operand.vmem [shape: f32[1,128], index: 8, kind: input, shape index: {}]
  %s9 = inlined_call_operand.vmem [shape: f32[1,128], index: 9, kind: input, shape index: {}]
  %s10 = inlined_call_operand.vmem [shape: f32[1,128], index: 10, kind: input, shape index: {}]
  %s11 = inlined_call_operand.hbm [shape: bf16[256,128], index: 11, kind: input, shape index: {}]
  %s12 = inlined_call_operand.vmem [shape: f32[1,128], index: 12, kind: input, shape index: {}]
  %s13 = inlined_call_operand.vmem [shape: f32[2,128], index: 13, kind: output, shape index: {}]
  %s14 = sld [smem:[#allocation0]]
  $region70: #{_forward_impl.1} parent=0
    _
  %s16 = ssub.s32 1, %s14
  %s17 = scalar_select 0, %s16, %s14
  $region1: #{_forward_impl.1} parent=0
    #allocation5 [shape = 'u8[131072]{0}', space=vmem, size = 0x20000, scoped, tag = 'input window, operand 7, single buffered']
    #allocation6 [shape = 's32[1]{0}', space=sflag, size = 0x4, scoped, tag = 'scoped memory for _forward_impl.1']
    #allocation7 [shape = 'u8[65536]{0}', space=vmem, size = 0x10000, scoped, tag = 'input window, operand 11, single buffered']
    #allocation8 [shape = 's32[1]{0}', space=sflag, size = 0x4, scoped, tag = 'scoped memory for _forward_impl.1']
    %18 = vsyncpa [#allocation6], 0
    %19 = vsyncpa [#allocation8], 0
    // Predicated region
    $region2: #{_forward_impl.1} parent=1 // pred_check
      _
    $region3: #{_forward_impl.1} parent=1 // pred_check_branch
      %21 = sbr.rel (0) target = $region5
    $region4: #{_forward_impl.1} parent=1 // pred_region
      _
    $region5: #{_forward_impl.1} parent=1 // pred_fallthru
      _
    // Predicated region
    $region6: #{_forward_impl.1} parent=1 // pred_check
      _
    $region7: #{_forward_impl.1} parent=1 // pred_check_branch
      %23 = sbr.rel (0) target = $region9
    $region8: #{_forward_impl.1} parent=1 // pred_region
      _
    $region9: #{_forward_impl.1} parent=1 // pred_fallthru
      _
    // Predicated region
    $region10: #{_forward_impl.1} parent=1 // pred_check
      _
    $region11: #{_forward_impl.1} parent=1 // pred_check_branch
      %25 = sbr.rel (0) target = $region13
    $region12: #{_forward_impl.1} parent=1 // pred_region
      _
    $region13: #{_forward_impl.1} parent=1 // pred_fallthru
      _
    // Predicated region
    $region14: #{_forward_impl.1} parent=1 // pred_check
      _
    $region15: #{_forward_impl.1} parent=1 // pred_check_branch
      %27 = sbr.rel (0) target = $region17
    $region16: #{_forward_impl.1} parent=1 // pred_region
      _
    $region17: #{_forward_impl.1} parent=1 // pred_fallthru
      _
    // Predicated region
    $region18: #{_forward_impl.1} parent=1 // pred_check
      _
    $region19: #{_forward_impl.1} parent=1 // pred_check_branch
      %29 = sbr.rel (0) target = $region21
    $region20: #{_forward_impl.1} parent=1 // pred_region
      _
    $region21: #{_forward_impl.1} parent=1 // pred_fallthru
      _
    // Predicated region
    $region22: #{_forward_impl.1} parent=1 // pred_check
      _
    $region23: #{_forward_impl.1} parent=1 // pred_check_branch
      %31 = sbr.rel (0) target = $region25
    $region24: #{_forward_impl.1} parent=1 // pred_region
      _
    $region25: #{_forward_impl.1} parent=1 // pred_fallthru
      _
    // Predicated region
    $region26: #{_forward_impl.1} parent=1 // pred_check
      _
    $region27: #{_forward_impl.1} parent=1 // pred_check_branch
      %33 = sbr.rel (0) target = $region29
    $region28: #{_forward_impl.1} parent=1 // pred_region
      _
    $region29: #{_forward_impl.1} parent=1 // pred_fallthru
      _
    // Predicated region
    $region30: #{_forward_impl.1} parent=1 // pred_check
      _
    $region31: #{_forward_impl.1} parent=1 // pred_check_branch
      %35 = sbr.rel (0) target = $region33
    $region32: #{_forward_impl.1} parent=1 // pred_region
      %s37 = ssub.s32 4096, 4096
      %38 = vsyncadd [#allocation6], %s37
      %s39 = sshll.u32 [#allocation5], 4
      %s40 = int_to_ptr.vmem [resolvable:$true] %s39
      %45 = dma.hbm_to_vmem [thread:$0]  %s7, 4096, %s40, [#allocation6], 64, 64, 4
    $region33: #{_forward_impl.1} parent=1 // pred_fallthru
      _
    // Predicated region
    $region34: #{_forward_impl.1} parent=1 // pred_check
      _
    $region35: #{_forward_impl.1} parent=1 // pred_check_branch
      %47 = sbr.rel (0) target = $region37
    $region36: #{_forward_impl.1} parent=1 // pred_region
      _
    $region37: #{_forward_impl.1} parent=1 // pred_fallthru
      _
    // Predicated region
    $region38: #{_forward_impl.1} parent=1 // pred_check
      _
    $region39: #{_forward_impl.1} parent=1 // pred_check_branch
      %49 = sbr.rel (0) target = $region41
    $region40: #{_forward_impl.1} parent=1 // pred_region
      _
    $region41: #{_forward_impl.1} parent=1 // pred_fallthru
      _
    // Predicated region
    $region42: #{_forward_impl.1} parent=1 // pred_check
      _
    $region43: #{_forward_impl.1} parent=1 // pred_check_branch
      %51 = sbr.rel (0) target = $region45
    $region44: #{_forward_impl.1} parent=1 // pred_region
      _
    $region45: #{_forward_impl.1} parent=1 // pred_fallthru
      _
    // Predicated region
    $region46: #{_forward_impl.1} parent=1 // pred_check
      _
    $region47: #{_forward_impl.1} parent=1 // pred_check_branch
      %53 = sbr.rel (0) target = $region49
    $region48: #{_forward_impl.1} parent=1 // pred_region
      %s55 = ssub.s32 2048, 2048
      %56 = vsyncadd [#allocation8], %s55
      %s57 = sshll.u32 [#allocation7], 4
      %s58 = int_to_ptr.vmem [resolvable:$true] %s57
      %63 = dma.hbm_to_vmem [thread:$0]  %s11, 2048, %s58, [#allocation8], 64, 64, 4
    $region49: #{_forward_impl.1} parent=1 // pred_fallthru
      _
    // Predicated region
    $region50: #{_forward_impl.1} parent=1 // pred_check
      _
    $region51: #{_forward_impl.1} parent=1 // pred_check_branch
      %65 = sbr.rel (0) target = $region53
    $region52: #{_forward_impl.1} parent=1 // pred_region
      _
    $region53: #{_forward_impl.1} parent=1 // pred_fallthru
      _
    // Predicated region
    $region54: #{_forward_impl.1} parent=1 // pred_check
      _
    $region55: #{_forward_impl.1} parent=1 // pred_check_branch
      %67 = sbr.rel (0) target = $region57
    $region56: #{_forward_impl.1} parent=1 // pred_region
      %68 = dma.done [#allocation6], 4096
    $region57: #{_forward_impl.1} parent=1 // pred_fallthru
      _
    // Predicated region
    $region58: #{_forward_impl.1} parent=1 // pred_check
      _
    $region59: #{_forward_impl.1} parent=1 // pred_check_branch
      %70 = sbr.rel (0) target = $region61
    $region60: #{_forward_impl.1} parent=1 // pred_region
      %71 = dma.done [#allocation8], 2048
    $region61: #{_forward_impl.1} parent=1 // pred_fallthru
      _
    %v73 = vld [vmem:[%s0] sm:$0xff]
    %v74 = vld [vmem:[%s0 + $0x8] sm:$0xff]
    %v75 = vpack.c.bf16 %v74, %v73
    %v76 = vld [vmem:[%s1] sm:$0xf]
    %v77 = vld [vmem:[%s1 + $0x4] sm:$0xf]
    %v78 = vld [vmem:[%s2] sm:$0x1]
    %v80 = vlaneseq
    %v81 = vshrl.u32 %v80, 7
    %v82 = vsub.s32 0, %v81
    %v83 = vrot.slane %v78, %v82
    %v87 = vunpack.c.l.b16 %v76
    %v88 = vunpack.c.l.b16 %v77
    %v89 = vpack.c.b16 %v88, %v87
    %vm91 = vcmask 130048
    %v93 = vsel %vm91, %v75, 0
    %95 = vmatprep.subr.bf16.mxu0 0
    %96 = vmatpush1.bf16.msra.mxu0 %v89
    %97 = vmatprep.subr.bf16.mxu0 0
    %98 = vmatpush1.bf16.msra.mxu0 0
    %99 = vmatprep.subr.bf16.mxu0 0
    %100 = vmatpush1.bf16.msra.mxu0 0
    %101 = vmatprep.subr.bf16.mxu0 0
    %102 = vmatpush1.bf16.msra.mxu0 0
    %103 = vmatprep.subr.bf16.mxu0 0
    %104 = vmatpush1.bf16.msra.mxu0 0
    %105 = vmatprep.subr.bf16.mxu0 0
    %106 = vmatpush1.bf16.msra.mxu0 0
    %107 = vmatprep.subr.bf16.mxu0 0
    %108 = vmatpush1.bf16.msra.mxu0 0
    %109 = vmatprep.subr.bf16.mxu0 0
    %110 = vmatpush1.bf16.msra.mxu0 0
    %111 = vmatprep.subr.bf16.mxu0 0
    %112 = vmatpush1.bf16.msra.mxu0 0
    %113 = vmatprep.subr.bf16.mxu0 0
    %114 = vmatpush1.bf16.msra.mxu0 0
    %115 = vmatprep.subr.bf16.mxu0 0
    %116 = vmatpush1.bf16.msra.mxu0 0
    %117 = vmatprep.subr.bf16.mxu0 0
    %118 = vmatpush1.bf16.msra.mxu0 0
    %119 = vmatprep.subr.bf16.mxu0 0
    %120 = vmatpush1.bf16.msra.mxu0 0
    %121 = vmatprep.subr.bf16.mxu0 0
    %122 = vmatpush1.bf16.msra.mxu0 0
    %123 = vmatprep.subr.bf16.mxu0 0
    %124 = vmatpush1.bf16.msra.mxu0 0
    %125 = vmatprep.subr.bf16.mxu0 0
    %126 = vmatpush1.bf16.msra.mxu0 0
    %127 = vmatprep.mubr.bf16.mxu0 0
    %128 = vmatmul.mubr.bf16.gmra.mrb[0].mxu0 %v93
    %v129 = vpop.f32.mrb[0].mxu0
    %v130 = vadd.f32 %v83, %v129
    %v131 = vpop.f32.mrb[0].mxu0
    %v132 = vpop.f32.mrb[0].mxu0
    %v133 = vadd.f32 %v83, %v132
    %v134 = vpop.f32.mrb[0].mxu0
    %135 = vdwg.mxu0
    %vm136 = vcmp.gt.f32.partialorder %v130, 0.0
    %vm137 = vcmp.gt.f32.partialorder %v133, 0.0
    %v138 = vmul.f32 %v130, 0.2
    %v139 = vmul.f32 %v133, 0.2
    %v140 = vsel %vm136, %v130, %v138
    %v141 = vsel %vm137, %v133, %v139
    %142 = vst [vmem:[#allocation2] sm:$0xff] 0.0
    %143 = vst [vmem:[#allocation2 + $0x8] sm:$0xff] 0.0
    %144 = vst [vmem:[#allocation2 + $0x10] sm:$0xf] 0.0
    %145 = vst [vmem:[#allocation2 + $0x1] sm:$0xff] %v140
    %146 = vst [vmem:[#allocation2 + $0xb] sm:$0xff] %v141
    %v147 = vld [vmem:[#allocation2] ss:$2 sm:$0xf]
    %s148 = scalar_lea.vmem [#allocation2], 1
    %v149 = vld [vmem:[%s148] ss:$2 sm:$0xf]
    %s150 = scalar_lea.vmem [#allocation2], 2
    %v151 = vld [vmem:[%s150] ss:$2 sm:$0xf]
    %s152 = scalar_lea.vmem [#allocation2], 3
    %v153 = vld [vmem:[%s152] ss:$2 sm:$0xf]
    %v154 = vpack.c.bf16 %v147, %v147
    %v155 = vpack.c.bf16 %v149, %v149
    %v156 = vpack.c.bf16 %v151, %v151
    %v157 = vpack.c.bf16 %v153, %v153
    %v158 = vld [vmem:[%s3] sm:$0xf]
    %v159 = vld [vmem:[%s3 + $0x4] sm:$0xf]
    %v160 = vld [vmem:[%s3 + $0x8] sm:$0xf]
    %v161 = vld [vmem:[%s3 + $0xc] sm:$0xf]
    %v162 = vld [vmem:[%s3 + $0x10] sm:$0xf]
    %v163 = vld [vmem:[%s3 + $0x14] sm:$0xf]
    %v164 = vld [vmem:[%s3 + $0x18] sm:$0xf]
    %v165 = vld [vmem:[%s3 + $0x1c] sm:$0xf]
    %v166 = vld [vmem:[%s3 + $0x20] sm:$0xf]
    %v167 = vld [vmem:[%s3 + $0x24] sm:$0xf]
    %v168 = vld [vmem:[%s3 + $0x28] sm:$0xf]
    %v169 = vld [vmem:[%s3 + $0x2c] sm:$0xf]
    %v170 = vld [vmem:[%s3 + $0x30] sm:$0xf]
    %v171 = vld [vmem:[%s3 + $0x34] sm:$0xf]
    %v172 = vld [vmem:[%s3 + $0x38] sm:$0xf]
    %v173 = vld [vmem:[%s3 + $0x3c] sm:$0xf]
    %v174 = vld [vmem:[%s3 + $0x40] sm:$0xf]
    %v175 = vld [vmem:[%s3 + $0x44] sm:$0xf]
    %v176 = vld [vmem:[%s3 + $0x48] sm:$0xf]
    %v177 = vld [vmem:[%s3 + $0x4c] sm:$0xf]
    %v178 = vld [vmem:[%s3 + $0x50] sm:$0xf]
    %v179 = vld [vmem:[%s3 + $0x54] sm:$0xf]
    %v180 = vld [vmem:[%s3 + $0x58] sm:$0xf]
    %v181 = vld [vmem:[%s3 + $0x5c] sm:$0xf]
    %v182 = vld [vmem:[%s3 + $0x60] sm:$0xf]
    %v183 = vld [vmem:[%s3 + $0x64] sm:$0xf]
    %v184 = vld [vmem:[%s3 + $0x68] sm:$0xf]
    %v185 = vld [vmem:[%s3 + $0x6c] sm:$0xf]
    %v186 = vld [vmem:[%s3 + $0x70] sm:$0xf]
    %v187 = vld [vmem:[%s3 + $0x74] sm:$0xf]
    %v188 = vld [vmem:[%s3 + $0x78] sm:$0xf]
    %v189 = vld [vmem:[%s3 + $0x7c] sm:$0xf]
    %v190 = vld [vmem:[%s3 + $0x80] sm:$0xf]
    %v191 = vld [vmem:[%s3 + $0x84] sm:$0xf]
    %v192 = vld [vmem:[%s3 + $0x88] sm:$0xf]
    %v193 = vld [vmem:[%s3 + $0x8c] sm:$0xf]
    %v194 = vld [vmem:[%s3 + $0x90] sm:$0xf]
    %v195 = vld [vmem:[%s3 + $0x94] sm:$0xf]
    %v196 = vld [vmem:[%s3 + $0x98] sm:$0xf]
    %v197 = vld [vmem:[%s3 + $0x9c] sm:$0xf]
    %v198 = vld [vmem:[%s3 + $0xa0] sm:$0xf]
    %v199 = vld [vmem:[%s3 + $0xa4] sm:$0xf]
    %v200 = vld [vmem:[%s3 + $0xa8] sm:$0xf]
    %v201 = vld [vmem:[%s3 + $0xac] sm:$0xf]
    %v202 = vld [vmem:[%s3 + $0xb0] sm:$0xf]
    %v203 = vld [vmem:[%s3 + $0xb4] sm:$0xf]
    %v204 = vld [vmem:[%s3 + $0xb8] sm:$0xf]
    %v205 = vld [vmem:[%s3 + $0xbc] sm:$0xf]
    %v206 = vld [vmem:[%s3 + $0xc0] sm:$0xf]
    %v207 = vld [vmem:[%s3 + $0xc4] sm:$0xf]
    %v208 = vld [vmem:[%s3 + $0xc8] sm:$0xf]
    %v209 = vld [vmem:[%s3 + $0xcc] sm:$0xf]
    %v210 = vld [vmem:[%s3 + $0xd0] sm:$0xf]
    %v211 = vld [vmem:[%s3 + $0xd4] sm:$0xf]
    %v212 = vld [vmem:[%s3 + $0xd8] sm:$0xf]
    %v213 = vld [vmem:[%s3 + $0xdc] sm:$0xf]
    %v214 = vld [vmem:[%s3 + $0xe0] sm:$0xf]
    %v215 = vld [vmem:[%s3 + $0xe4] sm:$0xf]
    %v216 = vld [vmem:[%s3 + $0xe8] sm:$0xf]
    %v217 = vld [vmem:[%s3 + $0xec] sm:$0xf]
    %v218 = vld [vmem:[%s3 + $0xf0] sm:$0xf]
    %v219 = vld [vmem:[%s3 + $0xf4] sm:$0xf]
    %v220 = vld [vmem:[%s3 + $0xf8] sm:$0xf]
    %v221 = vld [vmem:[%s3 + $0xfc] sm:$0xf]
    %v222 = vld [vmem:[%s4] sm:$0x1]
    %v224 = vlaneseq
    %v225 = vshrl.u32 %v224, 7
    %v226 = vsub.s32 0, %v225
    %v227 = vrot.slane %v222, %v226
    %v293 = vunpack.c.l.b16 %v158
    %v294 = vunpack.c.l.b16 %v159
    %v295 = vunpack.c.l.b16 %v160
    %v296 = vunpack.c.l.b16 %v161
    %v297 = vunpack.c.l.b16 %v162
    %v298 = vunpack.c.l.b16 %v163
    %v299 = vunpack.c.l.b16 %v164
    %v300 = vunpack.c.l.b16 %v165
    %v301 = vunpack.c.l.b16 %v166
    %v302 = vunpack.c.l.b16 %v167
    %v303 = vunpack.c.l.b16 %v168
    %v304 = vunpack.c.l.b16 %v169
    %v305 = vunpack.c.l.b16 %v170
    %v306 = vunpack.c.l.b16 %v171
    %v307 = vunpack.c.l.b16 %v172
    %v308 = vunpack.c.l.b16 %v173
    %v309 = vunpack.c.l.b16 %v174
    %v310 = vunpack.c.l.b16 %v175
    %v311 = vunpack.c.l.b16 %v176
    %v312 = vunpack.c.l.b16 %v177
    %v313 = vunpack.c.l.b16 %v178
    %v314 = vunpack.c.l.b16 %v179
    %v315 = vunpack.c.l.b16 %v180
    %v316 = vunpack.c.l.b16 %v181
    %v317 = vunpack.c.l.b16 %v182
    %v318 = vunpack.c.l.b16 %v183
    %v319 = vunpack.c.l.b16 %v184
    %v320 = vunpack.c.l.b16 %v185
    %v321 = vunpack.c.l.b16 %v186
    %v322 = vunpack.c.l.b16 %v187
    %v323 = vunpack.c.l.b16 %v188
    %v324 = vunpack.c.l.b16 %v189
    %v325 = vunpack.c.l.b16 %v190
    %v326 = vunpack.c.l.b16 %v191
    %v327 = vunpack.c.l.b16 %v192
    %v328 = vunpack.c.l.b16 %v193
    %v329 = vunpack.c.l.b16 %v194
    %v330 = vunpack.c.l.b16 %v195
    %v331 = vunpack.c.l.b16 %v196
    %v332 = vunpack.c.l.b16 %v197
    %v333 = vunpack.c.l.b16 %v198
    %v334 = vunpack.c.l.b16 %v199
    %v335 = vunpack.c.l.b16 %v200
    %v336 = vunpack.c.l.b16 %v201
    %v337 = vunpack.c.l.b16 %v202
    %v338 = vunpack.c.l.b16 %v203
    %v339 = vunpack.c.l.b16 %v204
    %v340 = vunpack.c.l.b16 %v205
    %v341 = vunpack.c.l.b16 %v206
    %v342 = vunpack.c.l.b16 %v207
    %v343 = vunpack.c.l.b16 %v208
    %v344 = vunpack.c.l.b16 %v209
    %v345 = vunpack.c.l.b16 %v210
    %v346 = vunpack.c.l.b16 %v211
    %v347 = vunpack.c.l.b16 %v212
    %v348 = vunpack.c.l.b16 %v213
    %v349 = vunpack.c.l.b16 %v214
    %v350 = vunpack.c.l.b16 %v215
    %v351 = vunpack.c.l.b16 %v216
    %v352 = vunpack.c.l.b16 %v217
    %v353 = vunpack.c.l.b16 %v218
    %v354 = vunpack.c.l.b16 %v219
    %v355 = vunpack.c.l.b16 %v220
    %v356 = vunpack.c.l.b16 %v221
    %v357 = vpack.c.b16 %v294, %v293
    %v358 = vpack.c.b16 %v296, %v295
    %v359 = vpack.c.b16 %v298, %v297
    %v360 = vpack.c.b16 %v300, %v299
    %v361 = vpack.c.b16 %v302, %v301
    %v362 = vpack.c.b16 %v304, %v303
    %v363 = vpack.c.b16 %v306, %v305
    %v364 = vpack.c.b16 %v308, %v307
    %v365 = vpack.c.b16 %v310, %v309
    %v366 = vpack.c.b16 %v312, %v311
    %v367 = vpack.c.b16 %v314, %v313
    %v368 = vpack.c.b16 %v316, %v315
    %v369 = vpack.c.b16 %v318, %v317
    %v370 = vpack.c.b16 %v320, %v319
    %v371 = vpack.c.b16 %v322, %v321
    %v372 = vpack.c.b16 %v324, %v323
    %v373 = vpack.c.b16 %v326, %v325
    %v374 = vpack.c.b16 %v328, %v327
    %v375 = vpack.c.b16 %v330, %v329
    %v376 = vpack.c.b16 %v332, %v331
    %v377 = vpack.c.b16 %v334, %v333
    %v378 = vpack.c.b16 %v336, %v335
    %v379 = vpack.c.b16 %v338, %v337
    %v380 = vpack.c.b16 %v340, %v339
    %v381 = vpack.c.b16 %v342, %v341
    %v382 = vpack.c.b16 %v344, %v343
    %v383 = vpack.c.b16 %v346, %v345
    %v384 = vpack.c.b16 %v348, %v347
    %v385 = vpack.c.b16 %v350, %v349
    %v386 = vpack.c.b16 %v352, %v351
    %v387 = vpack.c.b16 %v354, %v353
    %v388 = vpack.c.b16 %v356, %v355
    %421 = vmatprep.subr.bf16.mxu0 0
    %422 = vmatpush1.bf16.msra.mxu0 %v357
    %423 = vmatprep.subr.bf16.mxu0 0
    %424 = vmatpush1.bf16.msra.mxu0 %v358
    %425 = vmatprep.subr.bf16.mxu0 0
    %426 = vmatpush1.bf16.msra.mxu0 %v359
    %427 = vmatprep.subr.bf16.mxu0 0
    %428 = vmatpush1.bf16.msra.mxu0 %v360
    %429 = vmatprep.subr.bf16.mxu0 0
    %430 = vmatpush1.bf16.msra.mxu0 %v361
    %431 = vmatprep.subr.bf16.mxu0 0
    %432 = vmatpush1.bf16.msra.mxu0 %v362
    %433 = vmatprep.subr.bf16.mxu0 0
    %434 = vmatpush1.bf16.msra.mxu0 %v363
    %435 = vmatprep.subr.bf16.mxu0 0
    %436 = vmatpush1.bf16.msra.mxu0 %v364
    %437 = vmatprep.subr.bf16.mxu0 0
    %438 = vmatpush1.bf16.msra.mxu0 %v365
    %439 = vmatprep.subr.bf16.mxu0 0
    %440 = vmatpush1.bf16.msra.mxu0 %v366
    %441 = vmatprep.subr.bf16.mxu0 0
    %442 = vmatpush1.bf16.msra.mxu0 %v367
    %443 = vmatprep.subr.bf16.mxu0 0
    %444 = vmatpush1.bf16.msra.mxu0 %v368
    %445 = vmatprep.subr.bf16.mxu0 0
    %446 = vmatpush1.bf16.msra.mxu0 %v369
    %447 = vmatprep.subr.bf16.mxu0 0
    %448 = vmatpush1.bf16.msra.mxu0 %v370
    %449 = vmatprep.subr.bf16.mxu0 0
    %450 = vmatpush1.bf16.msra.mxu0 %v371
    %451 = vmatprep.subr.bf16.mxu0 0
    %452 = vmatpush1.bf16.msra.mxu0 %v372
    %453 = vmatprep.mubr.bf16.mxu0 %v155
    %454 = vmatmul.mubr.bf16.gmra.mrb[0].mxu0 %v154
    %v455 = vpop.f32.mrb[0].mxu0
    %v456 = vadd.f32 %v227, %v455
    %v457 = vpop.f32.mrb[0].mxu0
    %v458 = vpop.f32.mrb[0].mxu0
    %v459 = vpop.f32.mrb[0].mxu0
    %460 = vdwg.mxu0
    %461 = vmatprep.subr.bf16.mxu0 0
    %462 = vmatpush1.bf16.msra.mxu0 %v373
    %463 = vmatprep.subr.bf16.mxu0 0
    %464 = vmatpush1.bf16.msra.mxu0 %v374
    %465 = vmatprep.subr.bf16.mxu0 0
    %466 = vmatpush1.bf16.msra.mxu0 %v375
    %467 = vmatprep.subr.bf16.mxu0 0
    %468 = vmatpush1.bf16.msra.mxu0 %v376
    %469 = vmatprep.subr.bf16.mxu0 0
    %470 = vmatpush1.bf16.msra.mxu0 %v377
    %471 = vmatprep.subr.bf16.mxu0 0
    %472 = vmatpush1.bf16.msra.mxu0 %v378
    %473 = vmatprep.subr.bf16.mxu0 0
    %474 = vmatpush1.bf16.msra.mxu0 %v379
    %475 = vmatprep.subr.bf16.mxu0 0
    %476 = vmatpush1.bf16.msra.mxu0 %v380
    %477 = vmatprep.subr.bf16.mxu0 0
    %478 = vmatpush1.bf16.msra.mxu0 %v381
    %479 = vmatprep.subr.bf16.mxu0 0
    %480 = vmatpush1.bf16.msra.mxu0 %v382
    %481 = vmatprep.subr.bf16.mxu0 0
    %482 = vmatpush1.bf16.msra.mxu0 %v383
    %483 = vmatprep.subr.bf16.mxu0 0
    %484 = vmatpush1.bf16.msra.mxu0 %v384
    %485 = vmatprep.subr.bf16.mxu0 0
    %486 = vmatpush1.bf16.msra.mxu0 %v385
    %487 = vmatprep.subr.bf16.mxu0 0
    %488 = vmatpush1.bf16.msra.mxu0 %v386
    %489 = vmatprep.subr.bf16.mxu0 0
    %490 = vmatpush1.bf16.msra.mxu0 %v387
    %491 = vmatprep.subr.bf16.mxu0 0
    %492 = vmatpush1.bf16.msra.mxu0 %v388
    %493 = vmatprep.mubr.bf16.mxu0 %v157
    %494 = vmatmul.mubr.bf16.gmra.mrb[0].mxu0 %v156
    %v495 = vpop.f32.mrb[0].mxu0
    %v496 = vadd.f32 %v456, %v495
    %v497 = vpop.f32.mrb[0].mxu0
    %v498 = vpop.f32.mrb[0].mxu0
    %v499 = vpop.f32.mrb[0].mxu0
    %500 = vdwg.mxu0
    %s501 = scalar_lea.vmem [#allocation2], 10
    %v502 = vld [vmem:[%s501] ss:$2 sm:$0xf]
    %s503 = scalar_lea.vmem [#allocation2], 11
    %v504 = vld [vmem:[%s503] ss:$2 sm:$0xf]
    %s505 = scalar_lea.vmem [#allocation2], 12
    %v506 = vld [vmem:[%s505] ss:$2 sm:$0xf]
    %s507 = scalar_lea.vmem [#allocation2], 13
    %v508 = vld [vmem:[%s507] ss:$2 sm:$0xf]
    %v509 = vpack.c.bf16 %v502, %v502
    %v510 = vpack.c.bf16 %v504, %v504
    %v511 = vpack.c.bf16 %v506, %v506
    %v512 = vpack.c.bf16 %v508, %v508
    %513 = vmatprep.subr.bf16.mxu0 0
    %514 = vmatpush1.bf16.msra.mxu0 %v357
    %515 = vmatprep.subr.bf16.mxu0 0
    %516 = vmatpush1.bf16.msra.mxu0 %v358
    %517 = vmatprep.subr.bf16.mxu0 0
    %518 = vmatpush1.bf16.msra.mxu0 %v359
    %519 = vmatprep.subr.bf16.mxu0 0
    %520 = vmatpush1.bf16.msra.mxu0 %v360
    %521 = vmatprep.subr.bf16.mxu0 0
    %522 = vmatpush1.bf16.msra.mxu0 %v361
    %523 = vmatprep.subr.bf16.mxu0 0
    %524 = vmatpush1.bf16.msra.mxu0 %v362
    %525 = vmatprep.subr.bf16.mxu0 0
    %526 = vmatpush1.bf16.msra.mxu0 %v363
    %527 = vmatprep.subr.bf16.mxu0 0
    %528 = vmatpush1.bf16.msra.mxu0 %v364
    %529 = vmatprep.subr.bf16.mxu0 0
    %530 = vmatpush1.bf16.msra.mxu0 %v365
    %531 = vmatprep.subr.bf16.mxu0 0
    %532 = vmatpush1.bf16.msra.mxu0 %v366
    %533 = vmatprep.subr.bf16.mxu0 0
    %534 = vmatpush1.bf16.msra.mxu0 %v367
    %535 = vmatprep.subr.bf16.mxu0 0
    %536 = vmatpush1.bf16.msra.mxu0 %v368
    %537 = vmatprep.subr.bf16.mxu0 0
    %538 = vmatpush1.bf16.msra.mxu0 %v369
    %539 = vmatprep.subr.bf16.mxu0 0
    %540 = vmatpush1.bf16.msra.mxu0 %v370
    %541 = vmatprep.subr.bf16.mxu0 0
    %542 = vmatpush1.bf16.msra.mxu0 %v371
    %543 = vmatprep.subr.bf16.mxu0 0
    %544 = vmatpush1.bf16.msra.mxu0 %v372
    %545 = vmatprep.mubr.bf16.mxu0 %v510
    %546 = vmatmul.mubr.bf16.gmra.mrb[0].mxu0 %v509
    %v547 = vpop.f32.mrb[0].mxu0
    %v548 = vadd.f32 %v227, %v547
    %v549 = vpop.f32.mrb[0].mxu0
    %v550 = vpop.f32.mrb[0].mxu0
    %v551 = vpop.f32.mrb[0].mxu0
    %552 = vdwg.mxu0
    %553 = vmatprep.subr.bf16.mxu0 0
    %554 = vmatpush1.bf16.msra.mxu0 %v373
    %555 = vmatprep.subr.bf16.mxu0 0
    %556 = vmatpush1.bf16.msra.mxu0 %v374
    %557 = vmatprep.subr.bf16.mxu0 0
    %558 = vmatpush1.bf16.msra.mxu0 %v375
    %559 = vmatprep.subr.bf16.mxu0 0
    %560 = vmatpush1.bf16.msra.mxu0 %v376
    %561 = vmatprep.subr.bf16.mxu0 0
    %562 = vmatpush1.bf16.msra.mxu0 %v377
    %563 = vmatprep.subr.bf16.mxu0 0
    %564 = vmatpush1.bf16.msra.mxu0 %v378
    %565 = vmatprep.subr.bf16.mxu0 0
    %566 = vmatpush1.bf16.msra.mxu0 %v379
    %567 = vmatprep.subr.bf16.mxu0 0
    %568 = vmatpush1.bf16.msra.mxu0 %v380
    %569 = vmatprep.subr.bf16.mxu0 0
    %570 = vmatpush1.bf16.msra.mxu0 %v381
    %571 = vmatprep.subr.bf16.mxu0 0
    %572 = vmatpush1.bf16.msra.mxu0 %v382
    %573 = vmatprep.subr.bf16.mxu0 0
    %574 = vmatpush1.bf16.msra.mxu0 %v383
    %575 = vmatprep.subr.bf16.mxu0 0
    %576 = vmatpush1.bf16.msra.mxu0 %v384
    %577 = vmatprep.subr.bf16.mxu0 0
    %578 = vmatpush1.bf16.msra.mxu0 %v385
    %579 = vmatprep.subr.bf16.mxu0 0
    %580 = vmatpush1.bf16.msra.mxu0 %v386
    %581 = vmatprep.subr.bf16.mxu0 0
    %582 = vmatpush1.bf16.msra.mxu0 %v387
    %583 = vmatprep.subr.bf16.mxu0 0
    %584 = vmatpush1.bf16.msra.mxu0 %v388
    %585 = vmatprep.mubr.bf16.mxu0 %v512
    %586 = vmatmul.mubr.bf16.gmra.mrb[0].mxu0 %v511
    %v587 = vpop.f32.mrb[0].mxu0
    %v588 = vadd.f32 %v548, %v587
    %v589 = vpop.f32.mrb[0].mxu0
    %v590 = vpop.f32.mrb[0].mxu0
    %v591 = vpop.f32.mrb[0].mxu0
    %592 = vdwg.mxu0
    %v594 = vrot.slane %v588, 4
    %vm596 = vcmask 1043456
    %v597 = vsel %vm596, %v496, %v594
    %v598 = vrot.slane %v597, 4
    %v599 = vadd.f32 %v597, %v598
    %v600 = vrot.slane %v599, 2
    %v601 = vadd.f32 %v599, %v600
    %v602 = vrot.slane %v601, 1
    %v603 = vadd.f32 %v601, %v602
    %v604 = vrcp.pop 8.0
    %v605 = vmul.f32 %v603, %v604
    %v606 = vsub.f32 %v597, %v605
    %v607 = vmul.f32 %v606, %v606
    %v608 = vrot.slane %v607, 4
    %v609 = vadd.f32 %v607, %v608
    %v610 = vrot.slane %v609, 2
    %v611 = vadd.f32 %v609, %v610
    %v612 = vrot.slane %v611, 1
    %v613 = vadd.f32 %v611, %v612
    %v614 = vmul.f32 %v613, %v604
    %v615 = vld [vmem:[%s5] sm:$0x1]
    %v616 = vadd.f32 %v614, 1e-05
    %v617 = vrsqrt.pop %v616
    %v618 = vmul.f32 %v615, %v617
    %v619 = vld [vmem:[%s6] sm:$0x1]
    %v620 = vmul.f32 %v605, %v618
    %v621 = vsub.f32 %v619, %v620
    %v623 = vlaneseq
    %v624 = vshrl.u32 %v623, 7
    %v625 = vsub.s32 0, %v624
    %v626 = vrot.slane %v618, %v625
    %v628 = vmul.f32 %v597, %v626
    %v630 = vlaneseq
    %v631 = vshrl.u32 %v630, 7
    %v632 = vsub.s32 0, %v631
    %v633 = vrot.slane %v621, %v632
    %v635 = vadd.f32 %v628, %v633
    %vm636 = vcmp.gt.f32.partialorder %v635, 0.0
    %v637 = vmul.f32 %v635, 0.2
    %v638 = vsel %vm636, %v635, %v637
    %639 = vst [vmem:[#allocation3] sm:$0xff] 0.0
    %640 = vst [vmem:[#allocation3 + $0x8] sm:$0xf] 0.0
    %641 = vst [vmem:[#allocation3 + $0x1] sm:$0xf] %v638
    %642 = vst [vmem:[#allocation3 + $0x3] sm:$0xf0] %v638
    %v643 = vld [vmem:[#allocation3] ss:$2 sm:$0x3]
    %s644 = scalar_lea.vmem [#allocation3], 1
    %v645 = vld [vmem:[%s644] ss:$2 sm:$0x3]
    %s646 = scalar_lea.vmem [#allocation3], 2
    %v647 = vld [vmem:[%s646] ss:$2 sm:$0x3]
    %s648 = scalar_lea.vmem [#allocation3], 3
    %v649 = vld [vmem:[%s648] ss:$2 sm:$0x3]
    %v650 = vpack.c.bf16 %v643, %v643
    %v651 = vpack.c.bf16 %v645, %v645
    %v652 = vpack.c.bf16 %v647, %v647
    %v653 = vpack.c.bf16 %v649, %v649
    %v654 = vld [vmem:[#allocation5] sm:$0xf]
    %v655 = vld [vmem:[#allocation5 + $0x4] sm:$0xf]
    %v656 = vld [vmem:[#allocation5 + $0x8] sm:$0xf]
    %v657 = vld [vmem:[#allocation5 + $0xc] sm:$0xf]
    %v658 = vld [vmem:[#allocation5 + $0x10] sm:$0xf]
    %v659 = vld [vmem:[#allocation5 + $0x14] sm:$0xf]
    %v660 = vld [vmem:[#allocation5 + $0x18] sm:$0xf]
    %v661 = vld [vmem:[#allocation5 + $0x1c] sm:$0xf]
    %v662 = vld [vmem:[#allocation5 + $0x20] sm:$0xf]
    %v663 = vld [vmem:[#allocation5 + $0x24] sm:$0xf]
    %v664 = vld [vmem:[#allocation5 + $0x28] sm:$0xf]
    %v665 = vld [vmem:[#allocation5 + $0x2c] sm:$0xf]
    %v666 = vld [vmem:[#allocation5 + $0x30] sm:$0xf]
    %v667 = vld [vmem:[#allocation5 + $0x34] sm:$0xf]
    %v668 = vld [vmem:[#allocation5 + $0x38] sm:$0xf]
    %v669 = vld [vmem:[#allocation5 + $0x3c] sm:$0xf]
    %v670 = vld [vmem:[#allocation5 + $0x40] sm:$0xf]
    %v671 = vld [vmem:[#allocation5 + $0x44] sm:$0xf]
    %v672 = vld [vmem:[#allocation5 + $0x48] sm:$0xf]
    %v673 = vld [vmem:[#allocation5 + $0x4c] sm:$0xf]
    %v674 = vld [vmem:[#allocation5 + $0x50] sm:$0xf]
    %v675 = vld [vmem:[#allocation5 + $0x54] sm:$0xf]
    %v676 = vld [vmem:[#allocation5 + $0x58] sm:$0xf]
    %v677 = vld [vmem:[#allocation5 + $0x5c] sm:$0xf]
    %v678 = vld [vmem:[#allocation5 + $0x60] sm:$0xf]
    %v679 = vld [vmem:[#allocation5 + $0x64] sm:$0xf]
    %v680 = vld [vmem:[#allocation5 + $0x68] sm:$0xf]
    %v681 = vld [vmem:[#allocation5 + $0x6c] sm:$0xf]
    %v682 = vld [vmem:[#allocation5 + $0x70] sm:$0xf]
    %v683 = vld [vmem:[#allocation5 + $0x74] sm:$0xf]
    %v684 = vld [vmem:[#allocation5 + $0x78] sm:$0xf]
    %v685 = vld [vmem:[#allocation5 + $0x7c] sm:$0xf]
    %v686 = vld [vmem:[#allocation5 + $0x80] sm:$0xf]
    %v687 = vld [vmem:[#allocation5 + $0x84] sm:$0xf]
    %v688 = vld [vmem:[#allocation5 + $0x88] sm:$0xf]
    %v689 = vld [vmem:[#allocation5 + $0x8c] sm:$0xf]
    %v690 = vld [vmem:[#allocation5 + $0x90] sm:$0xf]
    %v691 = vld [vmem:[#allocation5 + $0x94] sm:$0xf]
    %v692 = vld [vmem:[#allocation5 + $0x98] sm:$0xf]
    %v693 = vld [vmem:[#allocation5 + $0x9c] sm:$0xf]
    %v694 = vld [vmem:[#allocation5 + $0xa0] sm:$0xf]
    %v695 = vld [vmem:[#allocation5 + $0xa4] sm:$0xf]
    %v696 = vld [vmem:[#allocation5 + $0xa8] sm:$0xf]
    %v697 = vld [vmem:[#allocation5 + $0xac] sm:$0xf]
    %v698 = vld [vmem:[#allocation5 + $0xb0] sm:$0xf]
    %v699 = vld [vmem:[#allocation5 + $0xb4] sm:$0xf]
    %v700 = vld [vmem:[#allocation5 + $0xb8] sm:$0xf]
    %v701 = vld [vmem:[#allocation5 + $0xbc] sm:$0xf]
    %v702 = vld [vmem:[#allocation5 + $0xc0] sm:$0xf]
    %v703 = vld [vmem:[#allocation5 + $0xc4] sm:$0xf]
    %v704 = vld [vmem:[#allocation5 + $0xc8] sm:$0xf]
    %v705 = vld [vmem:[#allocation5 + $0xcc] sm:$0xf]
    %v706 = vld [vmem:[#allocation5 + $0xd0] sm:$0xf]
    %v707 = vld [vmem:[#allocation5 + $0xd4] sm:$0xf]
    %v708 = vld [vmem:[#allocation5 + $0xd8] sm:$0xf]
    %v709 = vld [vmem:[#allocation5 + $0xdc] sm:$0xf]
    %v710 = vld [vmem:[#allocation5 + $0xe0] sm:$0xf]
    %v711 = vld [vmem:[#allocation5 + $0xe4] sm:$0xf]
    %v712 = vld [vmem:[#allocation5 + $0xe8] sm:$0xf]
    %v713 = vld [vmem:[#allocation5 + $0xec] sm:$0xf]
    %v714 = vld [vmem:[#allocation5 + $0xf0] sm:$0xf]
    %v715 = vld [vmem:[#allocation5 + $0xf4] sm:$0xf]
    %v716 = vld [vmem:[#allocation5 + $0xf8] sm:$0xf]
    %v717 = vld [vmem:[#allocation5 + $0xfc] sm:$0xf]
    %v718 = vld [vmem:[%s8] sm:$0x1]
    %v720 = vlaneseq
    %v721 = vshrl.u32 %v720, 7
    %v722 = vsub.s32 0, %v721
    %v723 = vrot.slane %v718, %v722
    %v789 = vunpack.c.l.b16 %v654
    %v790 = vunpack.c.l.b16 %v655
    %v791 = vunpack.c.l.b16 %v656
    %v792 = vunpack.c.l.b16 %v657
    %v793 = vunpack.c.l.b16 %v658
    %v794 = vunpack.c.l.b16 %v659
    %v795 = vunpack.c.l.b16 %v660
    %v796 = vunpack.c.l.b16 %v661
    %v797 = vunpack.c.l.b16 %v662
    %v798 = vunpack.c.l.b16 %v663
    %v799 = vunpack.c.l.b16 %v664
    %v800 = vunpack.c.l.b16 %v665
    %v801 = vunpack.c.l.b16 %v666
    %v802 = vunpack.c.l.b16 %v667
    %v803 = vunpack.c.l.b16 %v668
    %v804 = vunpack.c.l.b16 %v669
    %v805 = vunpack.c.l.b16 %v670
    %v806 = vunpack.c.l.b16 %v671
    %v807 = vunpack.c.l.b16 %v672
    %v808 = vunpack.c.l.b16 %v673
    %v809 = vunpack.c.l.b16 %v674
    %v810 = vunpack.c.l.b16 %v675
    %v811 = vunpack.c.l.b16 %v676
    %v812 = vunpack.c.l.b16 %v677
    %v813 = vunpack.c.l.b16 %v678
    %v814 = vunpack.c.l.b16 %v679
    %v815 = vunpack.c.l.b16 %v680
    %v816 = vunpack.c.l.b16 %v681
    %v817 = vunpack.c.l.b16 %v682
    %v818 = vunpack.c.l.b16 %v683
    %v819 = vunpack.c.l.b16 %v684
    %v820 = vunpack.c.l.b16 %v685
    %v821 = vunpack.c.l.b16 %v686
    %v822 = vunpack.c.l.b16 %v687
    %v823 = vunpack.c.l.b16 %v688
    %v824 = vunpack.c.l.b16 %v689
    %v825 = vunpack.c.l.b16 %v690
    %v826 = vunpack.c.l.b16 %v691
    %v827 = vunpack.c.l.b16 %v692
    %v828 = vunpack.c.l.b16 %v693
    %v829 = vunpack.c.l.b16 %v694
    %v830 = vunpack.c.l.b16 %v695
    %v831 = vunpack.c.l.b16 %v696
    %v832 = vunpack.c.l.b16 %v697
    %v833 = vunpack.c.l.b16 %v698
    %v834 = vunpack.c.l.b16 %v699
    %v835 = vunpack.c.l.b16 %v700
    %v836 = vunpack.c.l.b16 %v701
    %v837 = vunpack.c.l.b16 %v702
    %v838 = vunpack.c.l.b16 %v703
    %v839 = vunpack.c.l.b16 %v704
    %v840 = vunpack.c.l.b16 %v705
    %v841 = vunpack.c.l.b16 %v706
    %v842 = vunpack.c.l.b16 %v707
    %v843 = vunpack.c.l.b16 %v708
    %v844 = vunpack.c.l.b16 %v709
    %v845 = vunpack.c.l.b16 %v710
    %v846 = vunpack.c.l.b16 %v711
    %v847 = vunpack.c.l.b16 %v712
    %v848 = vunpack.c.l.b16 %v713
    %v849 = vunpack.c.l.b16 %v714
    %v850 = vunpack.c.l.b16 %v715
    %v851 = vunpack.c.l.b16 %v716
    %v852 = vunpack.c.l.b16 %v717
    %v853 = vpack.c.b16 %v790, %v789
    %v854 = vpack.c.b16 %v792, %v791
    %v855 = vpack.c.b16 %v794, %v793
    %v856 = vpack.c.b16 %v796, %v795
    %v857 = vpack.c.b16 %v798, %v797
    %v858 = vpack.c.b16 %v800, %v799
    %v859 = vpack.c.b16 %v802, %v801
    %v860 = vpack.c.b16 %v804, %v803
    %v861 = vpack.c.b16 %v806, %v805
    %v862 = vpack.c.b16 %v808, %v807
    %v863 = vpack.c.b16 %v810, %v809
    %v864 = vpack.c.b16 %v812, %v811
    %v865 = vpack.c.b16 %v814, %v813
    %v866 = vpack.c.b16 %v816, %v815
    %v867 = vpack.c.b16 %v818, %v817
    %v868 = vpack.c.b16 %v820, %v819
    %v869 = vpack.c.b16 %v822, %v821
    %v870 = vpack.c.b16 %v824, %v823
    %v871 = vpack.c.b16 %v826, %v825
    %v872 = vpack.c.b16 %v828, %v827
    %v873 = vpack.c.b16 %v830, %v829
    %v874 = vpack.c.b16 %v832, %v831
    %v875 = vpack.c.b16 %v834, %v833
    %v876 = vpack.c.b16 %v836, %v835
    %v877 = vpack.c.b16 %v838, %v837
    %v878 = vpack.c.b16 %v840, %v839
    %v879 = vpack.c.b16 %v842, %v841
    %v880 = vpack.c.b16 %v844, %v843
    %v881 = vpack.c.b16 %v846, %v845
    %v882 = vpack.c.b16 %v848, %v847
    %v883 = vpack.c.b16 %v850, %v849
    %v884 = vpack.c.b16 %v852, %v851
    %917 = vmatprep.subr.bf16.mxu0 0
    %918 = vmatpush1.bf16.msra.mxu0 %v853
    %919 = vmatprep.subr.bf16.mxu0 0
    %920 = vmatpush1.bf16.msra.mxu0 %v854
    %921 = vmatprep.subr.bf16.mxu0 0
    %922 = vmatpush1.bf16.msra.mxu0 %v855
    %923 = vmatprep.subr.bf16.mxu0 0
    %924 = vmatpush1.bf16.msra.mxu0 %v856
    %925 = vmatprep.subr.bf16.mxu0 0
    %926 = vmatpush1.bf16.msra.mxu0 %v857
    %927 = vmatprep.subr.bf16.mxu0 0
    %928 = vmatpush1.bf16.msra.mxu0 %v858
    %929 = vmatprep.subr.bf16.mxu0 0
    %930 = vmatpush1.bf16.msra.mxu0 %v859
    %931 = vmatprep.subr.bf16.mxu0 0
    %932 = vmatpush1.bf16.msra.mxu0 %v860
    %933 = vmatprep.subr.bf16.mxu0 0
    %934 = vmatpush1.bf16.msra.mxu0 %v861
    %935 = vmatprep.subr.bf16.mxu0 0
    %936 = vmatpush1.bf16.msra.mxu0 %v862
    %937 = vmatprep.subr.bf16.mxu0 0
    %938 = vmatpush1.bf16.msra.mxu0 %v863
    %939 = vmatprep.subr.bf16.mxu0 0
    %940 = vmatpush1.bf16.msra.mxu0 %v864
    %941 = vmatprep.subr.bf16.mxu0 0
    %942 = vmatpush1.bf16.msra.mxu0 %v865
    %943 = vmatprep.subr.bf16.mxu0 0
    %944 = vmatpush1.bf16.msra.mxu0 %v866
    %945 = vmatprep.subr.bf16.mxu0 0
    %946 = vmatpush1.bf16.msra.mxu0 %v867
    %947 = vmatprep.subr.bf16.mxu0 0
    %948 = vmatpush1.bf16.msra.mxu0 %v868
    %949 = vmatprep.mubr.bf16.mxu0 %v651
    %950 = vmatmul.mubr.bf16.gmra.mrb[0].mxu0 %v650
    %v951 = vpop.f32.mrb[0].mxu0
    %v952 = vadd.f32 %v723, %v951
    %v953 = vpop.f32.mrb[0].mxu0
    %v954 = vpop.f32.mrb[0].mxu0
    %v955 = vpop.f32.mrb[0].mxu0
    %956 = vdwg.mxu0
    %957 = vmatprep.subr.bf16.mxu0 0
    %958 = vmatpush1.bf16.msra.mxu0 %v869
    %959 = vmatprep.subr.bf16.mxu0 0
    %960 = vmatpush1.bf16.msra.mxu0 %v870
    %961 = vmatprep.subr.bf16.mxu0 0
    %962 = vmatpush1.bf16.msra.mxu0 %v871
    %963 = vmatprep.subr.bf16.mxu0 0
    %964 = vmatpush1.bf16.msra.mxu0 %v872
    %965 = vmatprep.subr.bf16.mxu0 0
    %966 = vmatpush1.bf16.msra.mxu0 %v873
    %967 = vmatprep.subr.bf16.mxu0 0
    %968 = vmatpush1.bf16.msra.mxu0 %v874
    %969 = vmatprep.subr.bf16.mxu0 0
    %970 = vmatpush1.bf16.msra.mxu0 %v875
    %971 = vmatprep.subr.bf16.mxu0 0
    %972 = vmatpush1.bf16.msra.mxu0 %v876
    %973 = vmatprep.subr.bf16.mxu0 0
    %974 = vmatpush1.bf16.msra.mxu0 %v877
    %975 = vmatprep.subr.bf16.mxu0 0
    %976 = vmatpush1.bf16.msra.mxu0 %v878
    %977 = vmatprep.subr.bf16.mxu0 0
    %978 = vmatpush1.bf16.msra.mxu0 %v879
    %979 = vmatprep.subr.bf16.mxu0 0
    %980 = vmatpush1.bf16.msra.mxu0 %v880
    %981 = vmatprep.subr.bf16.mxu0 0
    %982 = vmatpush1.bf16.msra.mxu0 %v881
    %983 = vmatprep.subr.bf16.mxu0 0
    %984 = vmatpush1.bf16.msra.mxu0 %v882
    %985 = vmatprep.subr.bf16.mxu0 0
    %986 = vmatpush1.bf16.msra.mxu0 %v883
    %987 = vmatprep.subr.bf16.mxu0 0
    %988 = vmatpush1.bf16.msra.mxu0 %v884
    %989 = vmatprep.mubr.bf16.mxu0 %v653
    %990 = vmatmul.mubr.bf16.gmra.mrb[0].mxu0 %v652
    %v991 = vpop.f32.mrb[0].mxu0
    %v992 = vadd.f32 %v952, %v991
    %v993 = vpop.f32.mrb[0].mxu0
    %v994 = vpop.f32.mrb[0].mxu0
    %v995 = vpop.f32.mrb[0].mxu0
    %996 = vdwg.mxu0
    %s997 = scalar_lea.vmem [#allocation3], 6
    %v998 = vld [vmem:[%s997] ss:$2 sm:$0x3]
    %s999 = scalar_lea.vmem [#allocation3], 7
    %v1000 = vld [vmem:[%s999] ss:$2 sm:$0x3]
    %s1001 = scalar_lea.vmem [#allocation3], 8
    %v1002 = vld [vmem:[%s1001] ss:$2 sm:$0x3]
    %s1003 = scalar_lea.vmem [#allocation3], 9
    %v1004 = vld [vmem:[%s1003] ss:$2 sm:$0x3]
    %v1005 = vpack.c.bf16 %v998, %v998
    %v1006 = vpack.c.bf16 %v1000, %v1000
    %v1007 = vpack.c.bf16 %v1002, %v1002
    %v1008 = vpack.c.bf16 %v1004, %v1004
    %1009 = vmatprep.subr.bf16.mxu0 0
    %1010 = vmatpush1.bf16.msra.mxu0 %v853
    %1011 = vmatprep.subr.bf16.mxu0 0
    %1012 = vmatpush1.bf16.msra.mxu0 %v854
    %1013 = vmatprep.subr.bf16.mxu0 0
    %1014 = vmatpush1.bf16.msra.mxu0 %v855
    %1015 = vmatprep.subr.bf16.mxu0 0
    %1016 = vmatpush1.bf16.msra.mxu0 %v856
    %1017 = vmatprep.subr.bf16.mxu0 0
    %1018 = vmatpush1.bf16.msra.mxu0 %v857
    %1019 = vmatprep.subr.bf16.mxu0 0
    %1020 = vmatpush1.bf16.msra.mxu0 %v858
    %1021 = vmatprep.subr.bf16.mxu0 0
    %1022 = vmatpush1.bf16.msra.mxu0 %v859
    %1023 = vmatprep.subr.bf16.mxu0 0
    %1024 = vmatpush1.bf16.msra.mxu0 %v860
    %1025 = vmatprep.subr.bf16.mxu0 0
    %1026 = vmatpush1.bf16.msra.mxu0 %v861
    %1027 = vmatprep.subr.bf16.mxu0 0
    %1028 = vmatpush1.bf16.msra.mxu0 %v862
    %1029 = vmatprep.subr.bf16.mxu0 0
    %1030 = vmatpush1.bf16.msra.mxu0 %v863
    %1031 = vmatprep.subr.bf16.mxu0 0
    %1032 = vmatpush1.bf16.msra.mxu0 %v864
    %1033 = vmatprep.subr.bf16.mxu0 0
    %1034 = vmatpush1.bf16.msra.mxu0 %v865
    %1035 = vmatprep.subr.bf16.mxu0 0
    %1036 = vmatpush1.bf16.msra.mxu0 %v866
    %1037 = vmatprep.subr.bf16.mxu0 0
    %1038 = vmatpush1.bf16.msra.mxu0 %v867
    %1039 = vmatprep.subr.bf16.mxu0 0
    %1040 = vmatpush1.bf16.msra.mxu0 %v868
    %1041 = vmatprep.mubr.bf16.mxu0 %v1006
    %1042 = vmatmul.mubr.bf16.gmra.mrb[0].mxu0 %v1005
    %v1043 = vpop.f32.mrb[0].mxu0
    %v1044 = vadd.f32 %v723, %v1043
    %v1045 = vpop.f32.mrb[0].mxu0
    %v1046 = vpop.f32.mrb[0].mxu0
    %v1047 = vpop.f32.mrb[0].mxu0
    %1048 = vdwg.mxu0
    %1049 = vmatprep.subr.bf16.mxu0 0
    %1050 = vmatpush1.bf16.msra.mxu0 %v869
    %1051 = vmatprep.subr.bf16.mxu0 0
    %1052 = vmatpush1.bf16.msra.mxu0 %v870
    %1053 = vmatprep.subr.bf16.mxu0 0
    %1054 = vmatpush1.bf16.msra.mxu0 %v871
    %1055 = vmatprep.subr.bf16.mxu0 0
    %1056 = vmatpush1.bf16.msra.mxu0 %v872
    %1057 = vmatprep.subr.bf16.mxu0 0
    %1058 = vmatpush1.bf16.msra.mxu0 %v873
    %1059 = vmatprep.subr.bf16.mxu0 0
    %1060 = vmatpush1.bf16.msra.mxu0 %v874
    %1061 = vmatprep.subr.bf16.mxu0 0
    %1062 = vmatpush1.bf16.msra.mxu0 %v875
    %1063 = vmatprep.subr.bf16.mxu0 0
    %1064 = vmatpush1.bf16.msra.mxu0 %v876
    %1065 = vmatprep.subr.bf16.mxu0 0
    %1066 = vmatpush1.bf16.msra.mxu0 %v877
    %1067 = vmatprep.subr.bf16.mxu0 0
    %1068 = vmatpush1.bf16.msra.mxu0 %v878
    %1069 = vmatprep.subr.bf16.mxu0 0
    %1070 = vmatpush1.bf16.msra.mxu0 %v879
    %1071 = vmatprep.subr.bf16.mxu0 0
    %1072 = vmatpush1.bf16.msra.mxu0 %v880
    %1073 = vmatprep.subr.bf16.mxu0 0
    %1074 = vmatpush1.bf16.msra.mxu0 %v881
    %1075 = vmatprep.subr.bf16.mxu0 0
    %1076 = vmatpush1.bf16.msra.mxu0 %v882
    %1077 = vmatprep.subr.bf16.mxu0 0
    %1078 = vmatpush1.bf16.msra.mxu0 %v883
    %1079 = vmatprep.subr.bf16.mxu0 0
    %1080 = vmatpush1.bf16.msra.mxu0 %v884
    %1081 = vmatprep.mubr.bf16.mxu0 %v1008
    %1082 = vmatmul.mubr.bf16.gmra.mrb[0].mxu0 %v1007
    %v1083 = vpop.f32.mrb[0].mxu0
    %v1084 = vadd.f32 %v1044, %v1083
    %v1085 = vpop.f32.mrb[0].mxu0
    %v1086 = vpop.f32.mrb[0].mxu0
    %v1087 = vpop.f32.mrb[0].mxu0
    %1088 = vdwg.mxu0
    %v1090 = vrot.slane %v1084, 6
    %vm1092 = vcmask 1041408
    %v1093 = vsel %vm1092, %v992, %v1090
    %v1094 = vsel %vm596, %v1093, 0.0
    %v1095 = vrot.slane %v1094, 4
    %v1096 = vadd.f32 %v1094, %v1095
    %v1097 = vrot.slane %v1096, 2
    %v1098 = vadd.f32 %v1096, %v1097
    %v1099 = vrot.slane %v1098, 1
    %v1100 = vadd.f32 %v1098, %v1099
    %v1101 = vrcp.pop 4.0
    %v1102 = vmul.f32 %v1100, %v1101
    %v1103 = vsub.f32 %v1093, %v1102
    %v1104 = vmul.f32 %v1103, %v1103
    %v1105 = vsel %vm596, %v1104, 0.0
    %v1106 = vrot.slane %v1105, 4
    %v1107 = vadd.f32 %v1105, %v1106
    %v1108 = vrot.slane %v1107, 2
    %v1109 = vadd.f32 %v1107, %v1108
    %v1110 = vrot.slane %v1109, 1
    %v1111 = vadd.f32 %v1109, %v1110
    %v1112 = vmul.f32 %v1111, %v1101
    %v1113 = vld [vmem:[%s9] sm:$0x1]
    %v1114 = vadd.f32 %v1112, 1e-05
    %v1115 = vrsqrt.pop %v1114
    %v1116 = vmul.f32 %v1113, %v1115
    %v1117 = vld [vmem:[%s10] sm:$0x1]
    %v1118 = vmul.f32 %v1102, %v1116
    %v1119 = vsub.f32 %v1117, %v1118
    %v1121 = vlaneseq
    %v1122 = vshrl.u32 %v1121, 7
    %v1123 = vsub.s32 0, %v1122
    %v1124 = vrot.slane %v1116, %v1123
    %v1126 = vmul.f32 %v1093, %v1124
    %v1128 = vlaneseq
    %v1129 = vshrl.u32 %v1128, 7
    %v1130 = vsub.s32 0, %v1129
    %v1131 = vrot.slane %v1119, %v1130
    %v1133 = vadd.f32 %v1126, %v1131
    %vm1134 = vcmp.gt.f32.partialorder %v1133, 0.0
    %v1135 = vmul.f32 %v1133, 0.2
    %v1136 = vsel %vm1134, %v1133, %v1135
    %1137 = vst [vmem:[#allocation4] sm:$0xf] %v1136
    %v1138 = vld [vmem:[#allocation4] ss:$2 sm:$0x3]
    %s1139 = scalar_lea.vmem [#allocation4], 1
    %v1140 = vld [vmem:[%s1139] ss:$2 sm:$0x3]
    %v1141 = vpack.c.bf16 %v1138, %v1138
    %v1142 = vpack.c.bf16 %v1140, %v1140
    %v1143 = vld [vmem:[#allocation7] sm:$0xf]
    %v1144 = vld [vmem:[#allocation7 + $0x4] sm:$0xf]
    %v1145 = vld [vmem:[#allocation7 + $0x8] sm:$0xf]
    %v1146 = vld [vmem:[#allocation7 + $0xc] sm:$0xf]
    %v1147 = vld [vmem:[#allocation7 + $0x10] sm:$0xf]
    %v1148 = vld [vmem:[#allocation7 + $0x14] sm:$0xf]
    %v1149 = vld [vmem:[#allocation7 + $0x18] sm:$0xf]
    %v1150 = vld [vmem:[#allocation7 + $0x1c] sm:$0xf]
    %v1151 = vld [vmem:[#allocation7 + $0x20] sm:$0xf]
    %v1152 = vld [vmem:[#allocation7 + $0x24] sm:$0xf]
    %v1153 = vld [vmem:[#allocation7 + $0x28] sm:$0xf]
    %v1154 = vld [vmem:[#allocation7 + $0x2c] sm:$0xf]
    %v1155 = vld [vmem:[#allocation7 + $0x30] sm:$0xf]
    %v1156 = vld [vmem:[#allocation7 + $0x34] sm:$0xf]
    %v1157 = vld [vmem:[#allocation7 + $0x38] sm:$0xf]
    %v1158 = vld [vmem:[#allocation7 + $0x3c] sm:$0xf]
    %v1159 = vld [vmem:[#allocation7 + $0x40] sm:$0xf]
    %v1160 = vld [vmem:[#allocation7 + $0x44] sm:$0xf]
    %v1161 = vld [vmem:[#allocation7 + $0x48] sm:$0xf]
    %v1162 = vld [vmem:[#allocation7 + $0x4c] sm:$0xf]
    %v1163 = vld [vmem:[#allocation7 + $0x50] sm:$0xf]
    %v1164 = vld [vmem:[#allocation7 + $0x54] sm:$0xf]
    %v1165 = vld [vmem:[#allocation7 + $0x58] sm:$0xf]
    %v1166 = vld [vmem:[#allocation7 + $0x5c] sm:$0xf]
    %v1167 = vld [vmem:[#allocation7 + $0x60] sm:$0xf]
    %v1168 = vld [vmem:[#allocation7 + $0x64] sm:$0xf]
    %v1169 = vld [vmem:[#allocation7 + $0x68] sm:$0xf]
    %v1170 = vld [vmem:[#allocation7 + $0x6c] sm:$0xf]
    %v1171 = vld [vmem:[#allocation7 + $0x70] sm:$0xf]
    %v1172 = vld [vmem:[#allocation7 + $0x74] sm:$0xf]
    %v1173 = vld [vmem:[#allocation7 + $0x78] sm:$0xf]
    %v1174 = vld [vmem:[#allocation7 + $0x7c] sm:$0xf]
    %v1175 = vld [vmem:[%s12] sm:$0x1]
    %v1177 = vlaneseq
    %v1178 = vshrl.u32 %v1177, 7
    %v1179 = vsub.s32 0, %v1178
    %v1180 = vrot.slane %v1175, %v1179
    %v1214 = vunpack.c.l.b16 %v1143
    %v1215 = vunpack.c.l.b16 %v1144
    %v1216 = vunpack.c.l.b16 %v1145
    %v1217 = vunpack.c.l.b16 %v1146
    %v1218 = vunpack.c.l.b16 %v1147
    %v1219 = vunpack.c.l.b16 %v1148
    %v1220 = vunpack.c.l.b16 %v1149
    %v1221 = vunpack.c.l.b16 %v1150
    %v1222 = vunpack.c.l.b16 %v1151
    %v1223 = vunpack.c.l.b16 %v1152
    %v1224 = vunpack.c.l.b16 %v1153
    %v1225 = vunpack.c.l.b16 %v1154
    %v1226 = vunpack.c.l.b16 %v1155
    %v1227 = vunpack.c.l.b16 %v1156
    %v1228 = vunpack.c.l.b16 %v1157
    %v1229 = vunpack.c.l.b16 %v1158
    %v1230 = vunpack.c.l.b16 %v1159
    %v1231 = vunpack.c.l.b16 %v1160
    %v1232 = vunpack.c.l.b16 %v1161
    %v1233 = vunpack.c.l.b16 %v1162
    %v1234 = vunpack.c.l.b16 %v1163
    %v1235 = vunpack.c.l.b16 %v1164
    %v1236 = vunpack.c.l.b16 %v1165
    %v1237 = vunpack.c.l.b16 %v1166
    %v1238 = vunpack.c.l.b16 %v1167
    %v1239 = vunpack.c.l.b16 %v1168
    %v1240 = vunpack.c.l.b16 %v1169
    %v1241 = vunpack.c.l.b16 %v1170
    %v1242 = vunpack.c.l.b16 %v1171
    %v1243 = vunpack.c.l.b16 %v1172
    %v1244 = vunpack.c.l.b16 %v1173
    %v1245 = vunpack.c.l.b16 %v1174
    %v1246 = vpack.c.b16 %v1215, %v1214
    %v1247 = vpack.c.b16 %v1217, %v1216
    %v1248 = vpack.c.b16 %v1219, %v1218
    %v1249 = vpack.c.b16 %v1221, %v1220
    %v1250 = vpack.c.b16 %v1223, %v1222
    %v1251 = vpack.c.b16 %v1225, %v1224
    %v1252 = vpack.c.b16 %v1227, %v1226
    %v1253 = vpack.c.b16 %v1229, %v1228
    %v1254 = vpack.c.b16 %v1231, %v1230
    %v1255 = vpack.c.b16 %v1233, %v1232
    %v1256 = vpack.c.b16 %v1235, %v1234
    %v1257 = vpack.c.b16 %v1237, %v1236
    %v1258 = vpack.c.b16 %v1239, %v1238
    %v1259 = vpack.c.b16 %v1241, %v1240
    %v1260 = vpack.c.b16 %v1243, %v1242
    %v1261 = vpack.c.b16 %v1245, %v1244
    %1278 = vmatprep.subr.bf16.mxu0 0
    %1279 = vmatpush1.bf16.msra.mxu0 %v1246
    %1280 = vmatprep.subr.bf16.mxu0 0
    %1281 = vmatpush1.bf16.msra.mxu0 %v1247
    %1282 = vmatprep.subr.bf16.mxu0 0
    %1283 = vmatpush1.bf16.msra.mxu0 %v1248
    %1284 = vmatprep.subr.bf16.mxu0 0
    %1285 = vmatpush1.bf16.msra.mxu0 %v1249
    %1286 = vmatprep.subr.bf16.mxu0 0
    %1287 = vmatpush1.bf16.msra.mxu0 %v1250
    %1288 = vmatprep.subr.bf16.mxu0 0
    %1289 = vmatpush1.bf16.msra.mxu0 %v1251
    %1290 = vmatprep.subr.bf16.mxu0 0
    %1291 = vmatpush1.bf16.msra.mxu0 %v1252
    %1292 = vmatprep.subr.bf16.mxu0 0
    %1293 = vmatpush1.bf16.msra.mxu0 %v1253
    %1294 = vmatprep.subr.bf16.mxu0 0
    %1295 = vmatpush1.bf16.msra.mxu0 %v1254
    %1296 = vmatprep.subr.bf16.mxu0 0
    %1297 = vmatpush1.bf16.msra.mxu0 %v1255
    %1298 = vmatprep.subr.bf16.mxu0 0
    %1299 = vmatpush1.bf16.msra.mxu0 %v1256
    %1300 = vmatprep.subr.bf16.mxu0 0
    %1301 = vmatpush1.bf16.msra.mxu0 %v1257
    %1302 = vmatprep.subr.bf16.mxu0 0
    %1303 = vmatpush1.bf16.msra.mxu0 %v1258
    %1304 = vmatprep.subr.bf16.mxu0 0
    %1305 = vmatpush1.bf16.msra.mxu0 %v1259
    %1306 = vmatprep.subr.bf16.mxu0 0
    %1307 = vmatpush1.bf16.msra.mxu0 %v1260
    %1308 = vmatprep.subr.bf16.mxu0 0
    %1309 = vmatpush1.bf16.msra.mxu0 %v1261
    %1310 = vmatprep.mubr.bf16.mxu0 %v1142
    %1311 = vmatmul.mubr.bf16.gmra.mrb[0].mxu0 %v1141
    %v1312 = vpop.f32.mrb[0].mxu0
    %v1313 = vadd.f32 %v1180, %v1312
    %v1314 = vpop.f32.mrb[0].mxu0
    %v1315 = vpop.f32.mrb[0].mxu0
    %v1316 = vpop.f32.mrb[0].mxu0
    %1317 = vdwg.mxu0
    %1318 = vst [vmem:[%s13] sm:$0x3] %v1313
    // Predicated region
    $region62: #{_forward_impl.1} parent=1 // pred_check
      _
    $region63: #{_forward_impl.1} parent=1 // pred_check_branch
      %1320 = sbr.rel (0) target = $region65
    $region64: #{_forward_impl.1} parent=1 // pred_region
      _
    $region65: #{_forward_impl.1} parent=1 // pred_fallthru
      _
    // Predicated region
    $region66: #{_forward_impl.1} parent=1 // pred_check
      _
    $region67: #{_forward_impl.1} parent=1 // pred_check_branch
      %1322 = sbr.rel (0) target = $region69
    $region68: #{_forward_impl.1} parent=1 // pred_region
      _
    $region69: #{_forward_impl.1} parent=1 // pred_fallthru
      _
    %1323 = vsyncpa [#allocation6], 1
    %1324 = vsyncpa [#allocation8], 1

</llo_original>
